<compile_context>
chip_gen: v7x
topology: tpu7x:2x2x1
jax: 0.10.0
libtpu: 0.0.40
codegen_flags: <defaults>
</compile_context>

<pallas_src>
import functools

import jax
import jax.numpy as jnp
from jax.experimental import pallas as pl
from jax.experimental.pallas import tpu as pltpu


def _layer_norm(x, g, b, eps):
    # x: (N, D) f32, g/b: (1, D) f32; PyTorch LayerNorm semantics (biased variance).
    mu = jnp.mean(x, axis=-1, keepdims=True)
    var = jnp.mean((x - mu) ** 2, axis=-1, keepdims=True)
    return (x - mu) * jax.lax.rsqrt(var + eps) * g + b


def encoder_layer_kernel(
    x_ref,
    wq_ref, bq_ref, wk_ref, bk_ref, wv_ref, bv_ref,
    wo_ref, bo_ref, ln1_g_ref, ln1_b_ref,
    w1_ref, fb1_ref, w2_ref, fb2_ref, ln2_g_ref, ln2_b_ref,
    out_ref, attn_ref,
    *, n_head, d_k, d_v, block_q, ln_eps,
):
    _, seq_len, d_model = x_ref.shape
    scale = 1.0 / (float(d_k) ** 0.5)          # temperature = d_k ** 0.5

    x = x_ref[0]                                # (L, D) bf16 -- full sequence (for K/V)
    if block_q == seq_len:
        xq = x                                  # whole sequence handled in this step
    else:
        q_start = pl.multiple_of(pl.program_id(1) * block_q, block_q)
        xq = x_ref[0, pl.ds(q_start, block_q), :]   # (Lq, D) bf16 query tile

    # ---- projections, heads batched (no lane slicing, no concat, no transposes) ----
    xk_b = jnp.broadcast_to(x, (n_head, seq_len, d_model))      # (H, L, D) bf16
    xq_b = jnp.broadcast_to(xq, (n_head, block_q, d_model))     # (H, Lq, D) bf16

    k = jnp.einsum('hld,hdk->hlk', xk_b, wk_ref[...],
                   preferred_element_type=jnp.float32) + bk_ref[...]   # (H, L, dk) f32
    v = jnp.einsum('hld,hdk->hlk', xk_b, wv_ref[...],
                   preferred_element_type=jnp.float32) + bv_ref[...]   # (H, L, dv) f32
    q = jnp.einsum('hld,hdk->hlk', xq_b, wq_ref[...],
                   preferred_element_type=jnp.float32) + bq_ref[...]   # (H, Lq, dk) f32

    q = (q * scale).astype(jnp.bfloat16)        # hoist 1/sqrt(d_k) onto q (once)
    k = k.astype(jnp.bfloat16)
    v = v.astype(jnp.bfloat16)

    # ---- scaled dot-product attention (softmax in f32) ----
    s = jnp.einsum('hqd,hkd->hqk', q, k,
                   preferred_element_type=jnp.float32)          # (H, Lq, L)
    s = s - jnp.max(s, axis=-1, keepdims=True)
    p = jnp.exp(s)
    p = p * pl.reciprocal(jnp.sum(p, axis=-1, keepdims=True), approx=True)
    attn_ref[0] = p.astype(attn_ref.dtype)      # write all heads in a single store

    ctx = jnp.einsum('hqk,hkd->hqd', p.astype(jnp.bfloat16), v,
                     preferred_element_type=jnp.float32)        # (H, Lq, dv)

    # ---- output projection: concat-over-heads fused as per-head matmul + head sum ----
    o_h = jnp.einsum('hqd,hdm->hqm', ctx.astype(jnp.bfloat16), wo_ref[...],
                     preferred_element_type=jnp.float32)        # (H, Lq, D)
    o = jnp.sum(o_h, axis=0) + bo_ref[...] + xq.astype(jnp.float32)
    o = _layer_norm(o, ln1_g_ref[...], ln1_b_ref[...], ln_eps)

    # ---- position-wise feed-forward + residual + layer norm ----
    h1 = jnp.dot(o.astype(jnp.bfloat16), w1_ref[...],
                 preferred_element_type=jnp.float32) + fb1_ref[...]
    h1 = jnp.maximum(h1, 0.0)
    f = jnp.dot(h1.astype(jnp.bfloat16), w2_ref[...],
                preferred_element_type=jnp.float32) + fb2_ref[...]
    f = _layer_norm(f + o, ln2_g_ref[...], ln2_b_ref[...], ln_eps)

    out_ref[0] = f.astype(out_ref.dtype)


def _pick_block_q(seq_len, cap=256):
    """Query-tile size: full sequence if small, else the largest divisor <= cap that is a
    multiple of 8 (to satisfy the (8,128) block constraint on the out/attn specs)."""
    if seq_len <= cap:
        return seq_len
    for c in range(cap, 7, -1):
        if seq_len % c == 0 and c % 8 == 0:
            return c
    return seq_len


def _vmem_limit_bytes(L, D, F, H, d_k, d_v, block_q):
    b16, b32 = 2, 4
    weights16 = (2 * H * D * d_k + H * D * d_v + H * d_v * D + D * F + F * D) * b16
    small32 = (2 * H * d_k + H * d_v + 7 * D + F) * b32
    x_blk = L * D * b16
    out_blk = block_q * D * b32
    attn_blk = H * block_q * L * b32
    interm = (H * L * (d_k + d_v) + H * block_q * d_k
              + 3 * H * block_q * L + H * block_q * d_v
              + H * block_q * D + block_q * F + 4 * block_q * D) * b32
    est = 2 * (weights16 + small32 + x_blk + out_blk + attn_blk) + interm
    # >= 32 MiB (default on v6e/v7x), <= 48 MiB so it still fits v7x's 64 MiB physical VMEM.
    return int(min(48 << 20, max(32 << 20, 2 * est)))


def my_self_atten_layer(x, params, *, n_head, d_k, d_v, ln_eps=1e-6):
    B, L, D = x.shape
    F_ = params["w1"].shape[1]
    H = n_head

    block_q = _pick_block_q(L)
    grid = (B, L // block_q)

    # ---- host-side prep: per-head weight layout + bf16 cast (f32 accumulation in-kernel) ----
    f16 = lambda a: a.astype(jnp.bfloat16)
    f32 = lambda a: a.astype(jnp.float32)
    wq3 = f16(params["wq"].reshape(D, H, d_k).transpose(1, 0, 2))   # (H, D, dk)
    wk3 = f16(params["wk"].reshape(D, H, d_k).transpose(1, 0, 2))   # (H, D, dk)
    wv3 = f16(params["wv"].reshape(D, H, d_v).transpose(1, 0, 2))   # (H, D, dv)
    wo3 = f16(params["wo"].reshape(H, d_v, D))                      # (H, dv, D)
    bq3 = f32(params["bq"].reshape(H, 1, d_k))
    bk3 = f32(params["bk"].reshape(H, 1, d_k))
    bv3 = f32(params["bv"].reshape(H, 1, d_v))

    def rep(shape):   # replicated (constant index map) operand -- DMA'd once
        return pl.BlockSpec(shape, lambda b, q: (0,) * len(shape))

    kernel = functools.partial(encoder_layer_kernel, n_head=H, d_k=d_k, d_v=d_v,
                               block_q=block_q, ln_eps=ln_eps)

    return pl.pallas_call(
        kernel,
        grid=grid,
        in_specs=[
            pl.BlockSpec((1, L, D), lambda b, q: (b, 0, 0)),        # x (full seq per batch)
            rep((H, D, d_k)), rep((H, 1, d_k)),                     # Wq, bq
            rep((H, D, d_k)), rep((H, 1, d_k)),                     # Wk, bk
            rep((H, D, d_v)), rep((H, 1, d_v)),                     # Wv, bv
            rep((H, d_v, D)), rep((1, D)),                          # Wo, bo
            rep((1, D)), rep((1, D)),                               # ln1 gamma, beta
            rep((D, F_)), rep((1, F_)),                             # W1, b1
            rep((F_, D)), rep((1, D)),                              # W2, b2
            rep((1, D)), rep((1, D)),                               # ln2 gamma, beta
        ],
        out_specs=[
            pl.BlockSpec((1, block_q, D), lambda b, q: (b, q, 0)),
            pl.BlockSpec((1, H, block_q, L), lambda b, q: (b, 0, q, 0)),
        ],
        out_shape=(
            jax.ShapeDtypeStruct((B, L, D), jnp.float32),           # enc_output
            jax.ShapeDtypeStruct((B, H, L, L), jnp.float32),        # enc_slf_attn
        ),
        compiler_params=pltpu.CompilerParams(
            dimension_semantics=("parallel", "parallel"),
            vmem_limit_bytes=_vmem_limit_bytes(L, D, F_, H, d_k, d_v, block_q),
        ),
    )(f16(x), wq3, bq3, wk3, bk3, wv3, bv3, wo3,
      f32(params["bo"]),
      f32(params["ln1_g"]), f32(params["ln1_b"]),
      f16(params["w1"]), f32(params["b1"]), f16(params["w2"]), f32(params["b2"]),
      f32(params["ln2_g"]), f32(params["ln2_b"]))


def init_params(key, d_model, d_feedforward, n_head, d_k, d_v):
    ks = jax.random.split(key, 12)
    s = lambda fan_in: 1.0 / jnp.sqrt(jnp.float32(fan_in))
    return {
        "wq": jax.random.normal(ks[0], (d_model, n_head * d_k), jnp.float32) * s(d_model),
        "bq": jax.random.normal(ks[1], (1, n_head * d_k), jnp.float32) * 0.02,
        "wk": jax.random.normal(ks[2], (d_model, n_head * d_k), jnp.float32) * s(d_model),
        "bk": jax.random.normal(ks[3], (1, n_head * d_k), jnp.float32) * 0.02,
        "wv": jax.random.normal(ks[4], (d_model, n_head * d_v), jnp.float32) * s(d_model),
        "bv": jax.random.normal(ks[5], (1, n_head * d_v), jnp.float32) * 0.02,
        "wo": jax.random.normal(ks[6], (n_head * d_v, d_model), jnp.float32) * s(n_head * d_v),
        "bo": jax.random.normal(ks[7], (1, d_model), jnp.float32) * 0.02,
        "ln1_g": jnp.ones((1, d_model), jnp.float32),
        "ln1_b": jnp.zeros((1, d_model), jnp.float32),
        "w1": jax.random.normal(ks[8], (d_model, d_feedforward), jnp.float32) * s(d_model),
        "b1": jax.random.normal(ks[9], (1, d_feedforward), jnp.float32) * 0.02,
        "w2": jax.random.normal(ks[10], (d_feedforward, d_model), jnp.float32) * s(d_feedforward),
        "b2": jax.random.normal(ks[11], (1, d_model), jnp.float32) * 0.02,
        "ln2_g": jnp.ones((1, d_model), jnp.float32),
        "ln2_b": jnp.zeros((1, d_model), jnp.float32),
    }


if __name__ == "__main__":
    B, L = 2, 8
    d_model, d_feedforward = 32, 64
    n_head, d_k, d_v = 4, 8, 8

    key = jax.random.PRNGKey(0)
    kx, kp = jax.random.split(key)
    x = jax.random.normal(kx, (B, L, d_model), jnp.float32)
    params = init_params(kp, d_model, d_feedforward, n_head, d_k, d_v)

    enc_output, enc_slf_attn = my_self_atten_layer(
        x, params, n_head=n_head, d_k=d_k, d_v=d_v)
    jax.block_until_ready(enc_output)
    jax.block_until_ready(enc_slf_attn)

    assert enc_output.shape == (B, L, d_model)
    assert enc_slf_attn.shape == (B, n_head, L, L)
    assert bool(jnp.isfinite(enc_output).all())
    # attention rows are probabilities (approx reciprocal => loose tolerance)
    assert bool(jnp.allclose(enc_slf_attn.sum(-1), 1.0, atol=5e-2))
    print("KERNEL_OK")
</pallas_src>

<mosaic_0001>
module attributes {stable_mosaic.version = 11 : i64} {
  func.func @encoder_layer_kernel(%arg0: i32, %arg1: i32, %arg2: memref<1x8x32xbf16, #tpu.memory_space<vmem>>, %arg3: memref<4x32x8xbf16, #tpu.memory_space<vmem>>, %arg4: memref<4x1x8xf32, #tpu.memory_space<vmem>>, %arg5: memref<4x32x8xbf16, #tpu.memory_space<vmem>>, %arg6: memref<4x1x8xf32, #tpu.memory_space<vmem>>, %arg7: memref<4x32x8xbf16, #tpu.memory_space<vmem>>, %arg8: memref<4x1x8xf32, #tpu.memory_space<vmem>>, %arg9: memref<4x8x32xbf16, #tpu.memory_space<vmem>>, %arg10: memref<1x32xf32, #tpu.memory_space<vmem>>, %arg11: memref<1x32xf32, #tpu.memory_space<vmem>>, %arg12: memref<1x32xf32, #tpu.memory_space<vmem>>, %arg13: memref<32x64xbf16, #tpu.memory_space<vmem>>, %arg14: memref<1x64xf32, #tpu.memory_space<vmem>>, %arg15: memref<64x32xbf16, #tpu.memory_space<vmem>>, %arg16: memref<1x32xf32, #tpu.memory_space<vmem>>, %arg17: memref<1x32xf32, #tpu.memory_space<vmem>>, %arg18: memref<1x32xf32, #tpu.memory_space<vmem>>, %arg19: memref<1x8x32xf32, #tpu.memory_space<vmem>>, %arg20: memref<1x4x8x8xf32, #tpu.memory_space<vmem>>) attributes {dimension_semantics = [#tpu.dimension_semantics<parallel>, #tpu.dimension_semantics<parallel>], iteration_bounds = array<i64: 2, 1>, scalar_prefetch = 0 : i64, scratch_operands = 0 : i64, tpu.core_type = #tpu.core_type<tc>, window_params = [{transform_indices = @transform_0, window_bounds = array<i64: 1, 8, 32>}, {pipeline_mode = #tpu.pipeline_mode<synchronous>, transform_indices = @transform_1, window_bounds = array<i64: 4, 32, 8>}, {pipeline_mode = #tpu.pipeline_mode<synchronous>, transform_indices = @transform_2, window_bounds = array<i64: 4, 1, 8>}, {pipeline_mode = #tpu.pipeline_mode<synchronous>, transform_indices = @transform_3, window_bounds = array<i64: 4, 32, 8>}, {pipeline_mode = #tpu.pipeline_mode<synchronous>, transform_indices = @transform_4, window_bounds = array<i64: 4, 1, 8>}, {pipeline_mode = #tpu.pipeline_mode<synchronous>, transform_indices = @transform_5, window_bounds = array<i64: 4, 32, 8>}, {pipeline_mode = #tpu.pipeline_mode<synchronous>, transform_indices = @transform_6, window_bounds = array<i64: 4, 1, 8>}, {pipeline_mode = #tpu.pipeline_mode<synchronous>, transform_indices = @transform_7, window_bounds = array<i64: 4, 8, 32>}, {pipeline_mode = #tpu.pipeline_mode<synchronous>, transform_indices = @transform_8, window_bounds = array<i64: 1, 32>}, {pipeline_mode = #tpu.pipeline_mode<synchronous>, transform_indices = @transform_9, window_bounds = array<i64: 1, 32>}, {pipeline_mode = #tpu.pipeline_mode<synchronous>, transform_indices = @transform_10, window_bounds = array<i64: 1, 32>}, {pipeline_mode = #tpu.pipeline_mode<synchronous>, transform_indices = @transform_11, window_bounds = array<i64: 32, 64>}, {pipeline_mode = #tpu.pipeline_mode<synchronous>, transform_indices = @transform_12, window_bounds = array<i64: 1, 64>}, {pipeline_mode = #tpu.pipeline_mode<synchronous>, transform_indices = @transform_13, window_bounds = array<i64: 64, 32>}, {pipeline_mode = #tpu.pipeline_mode<synchronous>, transform_indices = @transform_14, window_bounds = array<i64: 1, 32>}, {pipeline_mode = #tpu.pipeline_mode<synchronous>, transform_indices = @transform_15, window_bounds = array<i64: 1, 32>}, {pipeline_mode = #tpu.pipeline_mode<synchronous>, transform_indices = @transform_16, window_bounds = array<i64: 1, 32>}, {transform_indices = @transform_17, window_bounds = array<i64: 1, 8, 32>}, {transform_indices = @transform_18, window_bounds = array<i64: 1, 4, 8, 8>}]} {
    %c0 = arith.constant 0 : index
    %c0_0 = arith.constant 0 : index
    %c0_1 = arith.constant 0 : index
    %0 = vector.load %arg2[%c0, %c0_0, %c0_1] : memref<1x8x32xbf16, #tpu.memory_space<vmem>>, vector<1x8x32xbf16>
    %1 = vector.shape_cast %0 : vector<1x8x32xbf16> to vector<8x32xbf16>
    %2 = vector.shape_cast %1 : vector<8x32xbf16> to vector<1x8x32xbf16>
    %3 = vector.broadcast %2 : vector<1x8x32xbf16> to vector<4x8x32xbf16>
    %4 = vector.shape_cast %1 : vector<8x32xbf16> to vector<1x8x32xbf16>
    %5 = vector.broadcast %4 : vector<1x8x32xbf16> to vector<4x8x32xbf16>
    %c0_2 = arith.constant 0 : index
    %c0_3 = arith.constant 0 : index
    %c0_4 = arith.constant 0 : index
    %6 = vector.load %arg5[%c0_2, %c0_3, %c0_4] : memref<4x32x8xbf16, #tpu.memory_space<vmem>>, vector<4x32x8xbf16>
    "tpu.trace_start"() <{level = 10 : i32, message = "hld,hdk->hlk"}> : () -> ()
    %cst = arith.constant dense<0.000000e+00> : vector<4x8x8xf32>
    %7 = tpu.matmul %3, %6, %cst {dimension_numbers = #tpu.dot_dimension_numbers<[2], [1], [1], [2], [0, 0, 0, 1, 1, 2], [0], [0]>} : vector<4x8x32xbf16>, vector<4x32x8xbf16>, vector<4x8x8xf32> -> vector<4x8x8xf32>
    "tpu.trace_stop"() : () -> ()
    %c0_5 = arith.constant 0 : index
    %c0_6 = arith.constant 0 : index
    %c0_7 = arith.constant 0 : index
    %8 = vector.load %arg6[%c0_5, %c0_6, %c0_7] : memref<4x1x8xf32, #tpu.memory_space<vmem>>, vector<4x1x8xf32>
    %9 = vector.broadcast %8 : vector<4x1x8xf32> to vector<4x8x8xf32>
    %10 = arith.addf %7, %9 : vector<4x8x8xf32>
    %c0_8 = arith.constant 0 : index
    %c0_9 = arith.constant 0 : index
    %c0_10 = arith.constant 0 : index
    %11 = vector.load %arg7[%c0_8, %c0_9, %c0_10] : memref<4x32x8xbf16, #tpu.memory_space<vmem>>, vector<4x32x8xbf16>
    "tpu.trace_start"() <{level = 10 : i32, message = "hld,hdk->hlk"}> : () -> ()
    %cst_11 = arith.constant dense<0.000000e+00> : vector<4x8x8xf32>
    %12 = tpu.matmul %3, %11, %cst_11 {dimension_numbers = #tpu.dot_dimension_numbers<[2], [1], [1], [2], [0, 0, 0, 1, 1, 2], [0], [0]>} : vector<4x8x32xbf16>, vector<4x32x8xbf16>, vector<4x8x8xf32> -> vector<4x8x8xf32>
    "tpu.trace_stop"() : () -> ()
    %c0_12 = arith.constant 0 : index
    %c0_13 = arith.constant 0 : index
    %c0_14 = arith.constant 0 : index
    %13 = vector.load %arg8[%c0_12, %c0_13, %c0_14] : memref<4x1x8xf32, #tpu.memory_space<vmem>>, vector<4x1x8xf32>
    %14 = vector.broadcast %13 : vector<4x1x8xf32> to vector<4x8x8xf32>
    %15 = arith.addf %12, %14 : vector<4x8x8xf32>
    %c0_15 = arith.constant 0 : index
    %c0_16 = arith.constant 0 : index
    %c0_17 = arith.constant 0 : index
    %16 = vector.load %arg3[%c0_15, %c0_16, %c0_17] : memref<4x32x8xbf16, #tpu.memory_space<vmem>>, vector<4x32x8xbf16>
    "tpu.trace_start"() <{level = 10 : i32, message = "hld,hdk->hlk"}> : () -> ()
    %cst_18 = arith.constant dense<0.000000e+00> : vector<4x8x8xf32>
    %17 = tpu.matmul %5, %16, %cst_18 {dimension_numbers = #tpu.dot_dimension_numbers<[2], [1], [1], [2], [0, 0, 0, 1, 1, 2], [0], [0]>} : vector<4x8x32xbf16>, vector<4x32x8xbf16>, vector<4x8x8xf32> -> vector<4x8x8xf32>
    "tpu.trace_stop"() : () -> ()
    %c0_19 = arith.constant 0 : index
    %c0_20 = arith.constant 0 : index
    %c0_21 = arith.constant 0 : index
    %18 = vector.load %arg4[%c0_19, %c0_20, %c0_21] : memref<4x1x8xf32, #tpu.memory_space<vmem>>, vector<4x1x8xf32>
    %19 = vector.broadcast %18 : vector<4x1x8xf32> to vector<4x8x8xf32>
    %20 = arith.addf %17, %19 : vector<4x8x8xf32>
    %cst_22 = arith.constant 0.353553385 : f32
    %21 = vector.broadcast %cst_22 : f32 to vector<4x8x8xf32>
    %22 = arith.mulf %20, %21 : vector<4x8x8xf32>
    %23 = arith.truncf %22 : vector<4x8x8xf32> to vector<4x8x8xbf16>
    %24 = arith.truncf %10 : vector<4x8x8xf32> to vector<4x8x8xbf16>
    %25 = arith.truncf %15 : vector<4x8x8xf32> to vector<4x8x8xbf16>
    "tpu.trace_start"() <{level = 10 : i32, message = "hqd,hkd->hqk"}> : () -> ()
    %cst_23 = arith.constant dense<0.000000e+00> : vector<4x8x8xf32>
    %26 = tpu.matmul %23, %24, %cst_23 {dimension_numbers = #tpu.dot_dimension_numbers<[2], [2], [1], [1], [0, 0, 0, 1, 1, 1], [0], [0]>} : vector<4x8x8xbf16>, vector<4x8x8xbf16>, vector<4x8x8xf32> -> vector<4x8x8xf32>
    "tpu.trace_stop"() : () -> ()
    %cst_24 = arith.constant dense<0xFF800000> : vector<4x8xf32>
    %27 = vector.multi_reduction <maximumf>, %26, %cst_24 [2] : vector<4x8x8xf32> to vector<4x8xf32>
    %28 = vector.shape_cast %27 : vector<4x8xf32> to vector<4x8x1xf32>
    %29 = vector.broadcast %28 : vector<4x8x1xf32> to vector<4x8x8xf32>
    %30 = arith.subf %26, %29 : vector<4x8x8xf32>
    %31 = math.exp %30 : vector<4x8x8xf32>
    %cst_25 = arith.constant dense<0.000000e+00> : vector<4x8xf32>
    %32 = vector.multi_reduction <add>, %31, %cst_25 [2] : vector<4x8x8xf32> to vector<4x8xf32>
    %33 = vector.shape_cast %32 : vector<4x8xf32> to vector<4x8x1xf32>
    %34 = tpu.reciprocal %33 {approx = true} : vector<4x8x1xf32> -> vector<4x8x1xf32>
    %35 = vector.broadcast %34 : vector<4x8x1xf32> to vector<4x8x8xf32>
    %36 = arith.mulf %31, %35 : vector<4x8x8xf32>
    %c0_26 = arith.constant 0 : index
    %c0_27 = arith.constant 0 : index
    %c0_28 = arith.constant 0 : index
    %c0_29 = arith.constant 0 : index
    %37 = vector.load %arg20[%c0_26, %c0_27, %c0_28, %c0_29] : memref<1x4x8x8xf32, #tpu.memory_space<vmem>>, vector<1x4x8x8xf32>
    %38 = vector.shape_cast %37 : vector<1x4x8x8xf32> to vector<4x8x8xf32>
    %39 = vector.shape_cast %36 : vector<4x8x8xf32> to vector<1x4x8x8xf32>
    tpu.vector_store %arg20[%c0_26, %c0_27, %c0_28, %c0_29], %39 {strides = array<i32>} : memref<1x4x8x8xf32, #tpu.memory_space<vmem>>, vector<1x4x8x8xf32>,
    %40 = arith.truncf %36 : vector<4x8x8xf32> to vector<4x8x8xbf16>
    "tpu.trace_start"() <{level = 10 : i32, message = "hqk,hkd->hqd"}> : () -> ()
    %cst_30 = arith.constant dense<0.000000e+00> : vector<4x8x8xf32>
    %41 = tpu.matmul %40, %25, %cst_30 {dimension_numbers = #tpu.dot_dimension_numbers<[2], [1], [1], [2], [0, 0, 0, 1, 1, 2], [0], [0]>} : vector<4x8x8xbf16>, vector<4x8x8xbf16>, vector<4x8x8xf32> -> vector<4x8x8xf32>
    "tpu.trace_stop"() : () -> ()
    %42 = arith.truncf %41 : vector<4x8x8xf32> to vector<4x8x8xbf16>
    %c0_31 = arith.constant 0 : index
    %c0_32 = arith.constant 0 : index
    %c0_33 = arith.constant 0 : index
    %43 = vector.load %arg9[%c0_31, %c0_32, %c0_33] : memref<4x8x32xbf16, #tpu.memory_space<vmem>>, vector<4x8x32xbf16>
    "tpu.trace_start"() <{level = 10 : i32, message = "hqd,hdm->hqm"}> : () -> ()
    %cst_34 = arith.constant dense<0.000000e+00> : vector<4x8x32xf32>
    %44 = tpu.matmul %42, %43, %cst_34 {dimension_numbers = #tpu.dot_dimension_numbers<[2], [1], [1], [2], [0, 0, 0, 1, 1, 2], [0], [0]>} : vector<4x8x8xbf16>, vector<4x8x32xbf16>, vector<4x8x32xf32> -> vector<4x8x32xf32>
    "tpu.trace_stop"() : () -> ()
    %cst_35 = arith.constant dense<0.000000e+00> : vector<8x32xf32>
    %45 = vector.multi_reduction <add>, %44, %cst_35 [0] : vector<4x8x32xf32> to vector<8x32xf32>
    %c0_36 = arith.constant 0 : index
    %c0_37 = arith.constant 0 : index
    %46 = vector.load %arg10[%c0_36, %c0_37] : memref<1x32xf32, #tpu.memory_space<vmem>>, vector<1x32xf32>
    %47 = vector.broadcast %46 : vector<1x32xf32> to vector<8x32xf32>
    %48 = arith.addf %45, %47 : vector<8x32xf32>
    %49 = arith.extf %1 : vector<8x32xbf16> to vector<8x32xf32>
    %50 = arith.addf %48, %49 : vector<8x32xf32>
    %c0_38 = arith.constant 0 : index
    %c0_39 = arith.constant 0 : index
    %51 = vector.load %arg11[%c0_38, %c0_39] : memref<1x32xf32, #tpu.memory_space<vmem>>, vector<1x32xf32>
    %c0_40 = arith.constant 0 : index
    %c0_41 = arith.constant 0 : index
    %52 = vector.load %arg12[%c0_40, %c0_41] : memref<1x32xf32, #tpu.memory_space<vmem>>, vector<1x32xf32>
    %cst_42 = arith.constant dense<0.000000e+00> : vector<8xf32>
    %53 = vector.multi_reduction <add>, %50, %cst_42 [1] : vector<8x32xf32> to vector<8xf32>
    %54 = vector.shape_cast %53 : vector<8xf32> to vector<8x1xf32>
    %cst_43 = arith.constant 3.200000e+01 : f32
    %55 = vector.broadcast %cst_43 : f32 to vector<8x1xf32>
    %56 = arith.divf %54, %55 : vector<8x1xf32>
    %57 = vector.broadcast %56 : vector<8x1xf32> to vector<8x32xf32>
    %58 = arith.subf %50, %57 : vector<8x32xf32>
    %59 = arith.mulf %58, %58 : vector<8x32xf32>
    %cst_44 = arith.constant dense<0.000000e+00> : vector<8xf32>
    %60 = vector.multi_reduction <add>, %59, %cst_44 [1] : vector<8x32xf32> to vector<8xf32>
    %61 = vector.shape_cast %60 : vector<8xf32> to vector<8x1xf32>
    %cst_45 = arith.constant 3.200000e+01 : f32
    %62 = vector.broadcast %cst_45 : f32 to vector<8x1xf32>
    %63 = arith.divf %61, %62 : vector<8x1xf32>
    %64 = vector.broadcast %56 : vector<8x1xf32> to vector<8x32xf32>
    %65 = arith.subf %50, %64 : vector<8x32xf32>
    %cst_46 = arith.constant 9.99999997E-7 : f32
    %66 = vector.broadcast %cst_46 : f32 to vector<8x1xf32>
    %67 = arith.addf %63, %66 : vector<8x1xf32>
    %68 = math.rsqrt %67 : vector<8x1xf32>
    %69 = vector.broadcast %68 : vector<8x1xf32> to vector<8x32xf32>
    %70 = arith.mulf %65, %69 : vector<8x32xf32>
    %71 = vector.broadcast %51 : vector<1x32xf32> to vector<8x32xf32>
    %72 = arith.mulf %70, %71 : vector<8x32xf32>
    %73 = vector.broadcast %52 : vector<1x32xf32> to vector<8x32xf32>
    %74 = arith.addf %72, %73 : vector<8x32xf32>
    %75 = arith.truncf %74 : vector<8x32xf32> to vector<8x32xbf16>
    %c0_47 = arith.constant 0 : index
    %c0_48 = arith.constant 0 : index
    %76 = vector.load %arg13[%c0_47, %c0_48] : memref<32x64xbf16, #tpu.memory_space<vmem>>, vector<32x64xbf16>
    %cst_49 = arith.constant dense<0.000000e+00> : vector<8x64xf32>
    %77 = tpu.matmul %75, %76, %cst_49 {dimension_numbers = #tpu.dot_dimension_numbers<[1], [0], [0], [1], [0, 0, 1, 1], [], []>} : vector<8x32xbf16>, vector<32x64xbf16>, vector<8x64xf32> -> vector<8x64xf32>
    %c0_50 = arith.constant 0 : index
    %c0_51 = arith.constant 0 : index
    %78 = vector.load %arg14[%c0_50, %c0_51] : memref<1x64xf32, #tpu.memory_space<vmem>>, vector<1x64xf32>
    %79 = vector.broadcast %78 : vector<1x64xf32> to vector<8x64xf32>
    %80 = arith.addf %77, %79 : vector<8x64xf32>
    %cst_52 = arith.constant 0.000000e+00 : f32
    %81 = vector.broadcast %cst_52 : f32 to vector<8x64xf32>
    %82 = arith.maximumf %80, %81 : vector<8x64xf32>
    %83 = arith.truncf %82 : vector<8x64xf32> to vector<8x64xbf16>
    %c0_53 = arith.constant 0 : index
    %c0_54 = arith.constant 0 : index
    %84 = vector.load %arg15[%c0_53, %c0_54] : memref<64x32xbf16, #tpu.memory_space<vmem>>, vector<64x32xbf16>
    %cst_55 = arith.constant dense<0.000000e+00> : vector<8x32xf32>
    %85 = tpu.matmul %83, %84, %cst_55 {dimension_numbers = #tpu.dot_dimension_numbers<[1], [0], [0], [1], [0, 0, 1, 1], [], []>} : vector<8x64xbf16>, vector<64x32xbf16>, vector<8x32xf32> -> vector<8x32xf32>
    %c0_56 = arith.constant 0 : index
    %c0_57 = arith.constant 0 : index
    %86 = vector.load %arg16[%c0_56, %c0_57] : memref<1x32xf32, #tpu.memory_space<vmem>>, vector<1x32xf32>
    %87 = vector.broadcast %86 : vector<1x32xf32> to vector<8x32xf32>
    %88 = arith.addf %85, %87 : vector<8x32xf32>
    %89 = arith.addf %88, %74 : vector<8x32xf32>
    %c0_58 = arith.constant 0 : index
    %c0_59 = arith.constant 0 : index
    %90 = vector.load %arg17[%c0_58, %c0_59] : memref<1x32xf32, #tpu.memory_space<vmem>>, vector<1x32xf32>
    %c0_60 = arith.constant 0 : index
    %c0_61 = arith.constant 0 : index
    %91 = vector.load %arg18[%c0_60, %c0_61] : memref<1x32xf32, #tpu.memory_space<vmem>>, vector<1x32xf32>
    %cst_62 = arith.constant dense<0.000000e+00> : vector<8xf32>
    %92 = vector.multi_reduction <add>, %89, %cst_62 [1] : vector<8x32xf32> to vector<8xf32>
    %93 = vector.shape_cast %92 : vector<8xf32> to vector<8x1xf32>
    %cst_63 = arith.constant 3.200000e+01 : f32
    %94 = vector.broadcast %cst_63 : f32 to vector<8x1xf32>
    %95 = arith.divf %93, %94 : vector<8x1xf32>
    %96 = vector.broadcast %95 : vector<8x1xf32> to vector<8x32xf32>
    %97 = arith.subf %89, %96 : vector<8x32xf32>
    %98 = arith.mulf %97, %97 : vector<8x32xf32>
    %cst_64 = arith.constant dense<0.000000e+00> : vector<8xf32>
    %99 = vector.multi_reduction <add>, %98, %cst_64 [1] : vector<8x32xf32> to vector<8xf32>
    %100 = vector.shape_cast %99 : vector<8xf32> to vector<8x1xf32>
    %cst_65 = arith.constant 3.200000e+01 : f32
    %101 = vector.broadcast %cst_65 : f32 to vector<8x1xf32>
    %102 = arith.divf %100, %101 : vector<8x1xf32>
    %103 = vector.broadcast %95 : vector<8x1xf32> to vector<8x32xf32>
    %104 = arith.subf %89, %103 : vector<8x32xf32>
    %cst_66 = arith.constant 9.99999997E-7 : f32
    %105 = vector.broadcast %cst_66 : f32 to vector<8x1xf32>
    %106 = arith.addf %102, %105 : vector<8x1xf32>
    %107 = math.rsqrt %106 : vector<8x1xf32>
    %108 = vector.broadcast %107 : vector<8x1xf32> to vector<8x32xf32>
    %109 = arith.mulf %104, %108 : vector<8x32xf32>
    %110 = vector.broadcast %90 : vector<1x32xf32> to vector<8x32xf32>
    %111 = arith.mulf %109, %110 : vector<8x32xf32>
    %112 = vector.broadcast %91 : vector<1x32xf32> to vector<8x32xf32>
    %113 = arith.addf %111, %112 : vector<8x32xf32>
    %c0_67 = arith.constant 0 : index
    %c0_68 = arith.constant 0 : index
    %c0_69 = arith.constant 0 : index
    %114 = vector.load %arg19[%c0_67, %c0_68, %c0_69] : memref<1x8x32xf32, #tpu.memory_space<vmem>>, vector<1x8x32xf32>
    %115 = vector.shape_cast %114 : vector<1x8x32xf32> to vector<8x32xf32>
    %116 = vector.shape_cast %113 : vector<8x32xf32> to vector<1x8x32xf32>
    tpu.vector_store %arg19[%c0_67, %c0_68, %c0_69], %116 {strides = array<i32>} : memref<1x8x32xf32, #tpu.memory_space<vmem>>, vector<1x8x32xf32>,
    return
  }
  func.func @transform_0(%arg0: i32, %arg1: i32) -> (i32, i32, i32) {
    %c0_i32 = arith.constant 0 : i32
    %c0_i32_0 = arith.constant 0 : i32
    %c0_i32_1 = arith.constant 0 : i32
    return %arg0, %c0_i32, %c0_i32_0 : i32, i32, i32
  }
  func.func @transform_1(%arg0: i32, %arg1: i32) -> (i32, i32, i32) {
    %c0_i32 = arith.constant 0 : i32
    %c0_i32_0 = arith.constant 0 : i32
    %c0_i32_1 = arith.constant 0 : i32
    %c0_i32_2 = arith.constant 0 : i32
    return %c0_i32, %c0_i32_0, %c0_i32_1 : i32, i32, i32
  }
  func.func @transform_2(%arg0: i32, %arg1: i32) -> (i32, i32, i32) {
    %c0_i32 = arith.constant 0 : i32
    %c0_i32_0 = arith.constant 0 : i32
    %c0_i32_1 = arith.constant 0 : i32
    %c0_i32_2 = arith.constant 0 : i32
    return %c0_i32, %c0_i32_0, %c0_i32_1 : i32, i32, i32
  }
  func.func @transform_3(%arg0: i32, %arg1: i32) -> (i32, i32, i32) {
    %c0_i32 = arith.constant 0 : i32
    %c0_i32_0 = arith.constant 0 : i32
    %c0_i32_1 = arith.constant 0 : i32
    %c0_i32_2 = arith.constant 0 : i32
    return %c0_i32, %c0_i32_0, %c0_i32_1 : i32, i32, i32
  }
  func.func @transform_4(%arg0: i32, %arg1: i32) -> (i32, i32, i32) {
    %c0_i32 = arith.constant 0 : i32
    %c0_i32_0 = arith.constant 0 : i32
    %c0_i32_1 = arith.constant 0 : i32
    %c0_i32_2 = arith.constant 0 : i32
    return %c0_i32, %c0_i32_0, %c0_i32_1 : i32, i32, i32
  }
  func.func @transform_5(%arg0: i32, %arg1: i32) -> (i32, i32, i32) {
    %c0_i32 = arith.constant 0 : i32
    %c0_i32_0 = arith.constant 0 : i32
    %c0_i32_1 = arith.constant 0 : i32
    %c0_i32_2 = arith.constant 0 : i32
    return %c0_i32, %c0_i32_0, %c0_i32_1 : i32, i32, i32
  }
  func.func @transform_6(%arg0: i32, %arg1: i32) -> (i32, i32, i32) {
    %c0_i32 = arith.constant 0 : i32
    %c0_i32_0 = arith.constant 0 : i32
    %c0_i32_1 = arith.constant 0 : i32
    %c0_i32_2 = arith.constant 0 : i32
    return %c0_i32, %c0_i32_0, %c0_i32_1 : i32, i32, i32
  }
  func.func @transform_7(%arg0: i32, %arg1: i32) -> (i32, i32, i32) {
    %c0_i32 = arith.constant 0 : i32
    %c0_i32_0 = arith.constant 0 : i32
    %c0_i32_1 = arith.constant 0 : i32
    %c0_i32_2 = arith.constant 0 : i32
    return %c0_i32, %c0_i32_0, %c0_i32_1 : i32, i32, i32
  }
  func.func @transform_8(%arg0: i32, %arg1: i32) -> (i32, i32) {
    %c0_i32 = arith.constant 0 : i32
    %c0_i32_0 = arith.constant 0 : i32
    %c0_i32_1 = arith.constant 0 : i32
    return %c0_i32, %c0_i32_0 : i32, i32
  }
  func.func @transform_9(%arg0: i32, %arg1: i32) -> (i32, i32) {
    %c0_i32 = arith.constant 0 : i32
    %c0_i32_0 = arith.constant 0 : i32
    %c0_i32_1 = arith.constant 0 : i32
    return %c0_i32, %c0_i32_0 : i32, i32
  }
  func.func @transform_10(%arg0: i32, %arg1: i32) -> (i32, i32) {
    %c0_i32 = arith.constant 0 : i32
    %c0_i32_0 = arith.constant 0 : i32
    %c0_i32_1 = arith.constant 0 : i32
    return %c0_i32, %c0_i32_0 : i32, i32
  }
  func.func @transform_11(%arg0: i32, %arg1: i32) -> (i32, i32) {
    %c0_i32 = arith.constant 0 : i32
    %c0_i32_0 = arith.constant 0 : i32
    %c0_i32_1 = arith.constant 0 : i32
    return %c0_i32, %c0_i32_0 : i32, i32
  }
  func.func @transform_12(%arg0: i32, %arg1: i32) -> (i32, i32) {
    %c0_i32 = arith.constant 0 : i32
    %c0_i32_0 = arith.constant 0 : i32
    %c0_i32_1 = arith.constant 0 : i32
    return %c0_i32, %c0_i32_0 : i32, i32
  }
  func.func @transform_13(%arg0: i32, %arg1: i32) -> (i32, i32) {
    %c0_i32 = arith.constant 0 : i32
    %c0_i32_0 = arith.constant 0 : i32
    %c0_i32_1 = arith.constant 0 : i32
    return %c0_i32, %c0_i32_0 : i32, i32
  }
  func.func @transform_14(%arg0: i32, %arg1: i32) -> (i32, i32) {
    %c0_i32 = arith.constant 0 : i32
    %c0_i32_0 = arith.constant 0 : i32
    %c0_i32_1 = arith.constant 0 : i32
    return %c0_i32, %c0_i32_0 : i32, i32
  }
  func.func @transform_15(%arg0: i32, %arg1: i32) -> (i32, i32) {
    %c0_i32 = arith.constant 0 : i32
    %c0_i32_0 = arith.constant 0 : i32
    %c0_i32_1 = arith.constant 0 : i32
    return %c0_i32, %c0_i32_0 : i32, i32
  }
  func.func @transform_16(%arg0: i32, %arg1: i32) -> (i32, i32) {
    %c0_i32 = arith.constant 0 : i32
    %c0_i32_0 = arith.constant 0 : i32
    %c0_i32_1 = arith.constant 0 : i32
    return %c0_i32, %c0_i32_0 : i32, i32
  }
  func.func @transform_17(%arg0: i32, %arg1: i32) -> (i32, i32, i32) {
    %c0_i32 = arith.constant 0 : i32
    %c0_i32_0 = arith.constant 0 : i32
    return %arg0, %arg1, %c0_i32 : i32, i32, i32
  }
  func.func @transform_18(%arg0: i32, %arg1: i32) -> (i32, i32, i32, i32) {
    %c0_i32 = arith.constant 0 : i32
    %c0_i32_0 = arith.constant 0 : i32
    %c0_i32_1 = arith.constant 0 : i32
    return %arg0, %c0_i32, %arg1, %c0_i32_0 : i32, i32, i32, i32
  }
}

</mosaic_0001>

<llo_original>
// kernel: tpu_custom_call.1
$region0: #{tpu_custom_call.1}
  #allocation0 [shape = 'u32[]', space=smem, size = 0x4, offset = 0x4, fixed_abs, tag = 'smem constant byte address 0x4 - core index']
  #allocation1 [shape = 'u32[144,128]{1,0:T(1,128)}', space=vmem, size = 0x12000, scoped, tag = 'internal scratch']
  %s0 = inlined_call_operand.vmem [shape: bf16[2,8,32], index: 0, kind: input, shape index: {}]
  %s1 = inlined_call_operand.vmem [shape: bf16[4,32,8], index: 1, kind: input, shape index: {}]
  %s2 = inlined_call_operand.vmem [shape: f32[4,1,8], index: 2, kind: input, shape index: {}]
  %s3 = inlined_call_operand.vmem [shape: bf16[4,32,8], index: 3, kind: input, shape index: {}]
  %s4 = inlined_call_operand.vmem [shape: f32[4,1,8], index: 4, kind: input, shape index: {}]
  %s5 = inlined_call_operand.vmem [shape: bf16[4,32,8], index: 5, kind: input, shape index: {}]
  %s6 = inlined_call_operand.vmem [shape: f32[4,1,8], index: 6, kind: input, shape index: {}]
  %s7 = inlined_call_operand.vmem [shape: bf16[4,8,32], index: 7, kind: input, shape index: {}]
  %s8 = inlined_call_operand.vmem [shape: f32[1,32], index: 8, kind: input, shape index: {}]
  %s9 = inlined_call_operand.vmem [shape: f32[1,32], index: 9, kind: input, shape index: {}]
  %s10 = inlined_call_operand.vmem [shape: f32[1,32], index: 10, kind: input, shape index: {}]
  %s11 = inlined_call_operand.vmem [shape: bf16[32,64], index: 11, kind: input, shape index: {}]
  %s12 = inlined_call_operand.vmem [shape: f32[1,64], index: 12, kind: input, shape index: {}]
  %s13 = inlined_call_operand.vmem [shape: bf16[64,32], index: 13, kind: input, shape index: {}]
  %s14 = inlined_call_operand.vmem [shape: f32[1,32], index: 14, kind: input, shape index: {}]
  %s15 = inlined_call_operand.vmem [shape: f32[1,32], index: 15, kind: input, shape index: {}]
  %s16 = inlined_call_operand.vmem [shape: f32[1,32], index: 16, kind: input, shape index: {}]
  %s17 = inlined_call_operand.hbm [shape: f32[2,8,32], index: 17, kind: output, shape index: {0}]
  %s18 = inlined_call_operand.hbm [shape: f32[2,4,8,8], index: 18, kind: output, shape index: {1}]
  %19 = xla_tuple %s17, %s18
  %s20 = sld [smem:[#allocation0]]
  $region109: #{tpu_custom_call.1} parent=0
    _
  %s22 = ssub.s32 1, %s20
  %s23 = scalar_select 0, %s22, %s20
  $region1: #{tpu_custom_call.1} parent=0
    #allocation2 [shape = 'u8[8192]{0}', space=vmem, size = 0x2000, scoped, tag = 'output window, operand 0']
    #allocation3 [shape = 's32[2]{0}', space=sflag, size = 0x8, scoped, tag = 'scoped memory for tpu_custom_call.1']
    #allocation4 [shape = 'u8[32768]{0}', space=vmem, size = 0x8000, scoped, tag = 'output window, operand 1']
    #allocation5 [shape = 's32[2]{0}', space=sflag, size = 0x8, scoped, tag = 'scoped memory for tpu_custom_call.1']
    %24 = vsyncpa [#allocation3], 0
    %s25 = scalar_lea.sflag [#allocation3], 1
    %26 = vsyncpa %s25, 0
    %27 = vsyncpa [#allocation5], 0
    %s28 = scalar_lea.sflag [#allocation5], 1
    %29 = vsyncpa %s28, 0
    loop: start=0, step=1, limit=4
    $region2: #{tpu_custom_call.1} parent=1 // loop_pre_header
      _
    $region3: #{tpu_custom_call.1} parent=1 // loop_header
      %s31 = sphi 0, %s35
      %p32 = scmp.ge.s32.totalorder %s31, 4
      %s38 = sphi 0, %s50
      %s39 = sphi 0, %s46
      %s40 = sphi 0, %s38
      %s41 = sphi 0, %s39
      %s42 = sphi 0, %s40
      %s43 = sphi 0, %s41
      %s53 = sphi 0, %s55
      %s56 = sphi 0, %s53
      %s57 = sphi 0, %s56
      %s73 = sphi 0, %s57
      %s77 = sphi 0, %s77
      %s79 = sphi 0, %s77
      %s80 = sphi 0, %s79
      %s94 = sphi 0, %s80
      %s98 = sphi 0, %s98
      %s100 = sphi 0, %s98
      %s101 = sphi 0, %s100
      %s115 = sphi 0, %s101
      %s119 = sphi 0, %s119
      %s121 = sphi 0, %s119
      %s122 = sphi 0, %s121
      %s136 = sphi 0, %s122
      %s140 = sphi 0, %s140
      %s142 = sphi 0, %s140
      %s143 = sphi 0, %s142
      %s157 = sphi 0, %s143
      %s161 = sphi 0, %s161
      %s163 = sphi 0, %s161
      %s164 = sphi 0, %s163
      %s178 = sphi 0, %s164
      %s182 = sphi 0, %s182
      %s184 = sphi 0, %s182
      %s185 = sphi 0, %s184
      %s199 = sphi 0, %s185
      %s203 = sphi 0, %s203
      %s205 = sphi 0, %s203
      %s206 = sphi 0, %s205
      %s220 = sphi 0, %s206
      %s224 = sphi 0, %s224
      %s226 = sphi 0, %s224
      %s227 = sphi 0, %s226
      %s241 = sphi 0, %s227
      %s245 = sphi 0, %s245
      %s247 = sphi 0, %s245
      %s248 = sphi 0, %s247
      %s262 = sphi 0, %s248
      %s266 = sphi 0, %s266
      %s268 = sphi 0, %s266
      %s269 = sphi 0, %s268
      %s283 = sphi 0, %s269
      %s287 = sphi 0, %s287
      %s289 = sphi 0, %s287
      %s290 = sphi 0, %s289
      %s304 = sphi 0, %s290
      %s308 = sphi 0, %s308
      %s310 = sphi 0, %s308
      %s311 = sphi 0, %s310
      %s325 = sphi 0, %s311
      %s329 = sphi 0, %s329
      %s331 = sphi 0, %s329
      %s332 = sphi 0, %s331
      %s346 = sphi 0, %s332
      %s350 = sphi 0, %s350
      %s352 = sphi 0, %s350
      %s353 = sphi 0, %s352
      %s367 = sphi 0, %s353
      %s371 = sphi 0, %s371
      %s373 = sphi 0, %s371
      %s374 = sphi 0, %s373
      %s388 = sphi 0, %s374
      %s392 = sphi 0, %s392
      %s394 = sphi 0, %s392
      %s395 = sphi 0, %s394
      %s409 = sphi 0, %s395
      %s417 = sphi 0, %s419
      %s420 = sphi 0, %s417
      %s421 = sphi 0, %s420
      %s437 = sphi 0, %s421
      %s445 = sphi 0, %s447
      %s448 = sphi 0, %s445
      %s449 = sphi 0, %s448
      %s465 = sphi 0, %s449
    $region4: #{tpu_custom_call.1} parent=1 // loop_header_branch
      %34 = sbr.rel (%p32) target = $region8
    $region5: #{tpu_custom_call.1} parent=1 // loop_body
      %s36 = ssub.s32 %s31, 1
      %s37 = ssub.s32 %s31, 2
      %s44 = sadd.s32 1, %s39
      %p45 = scmp.ge.s32.totalorder %s44, 1
      %s46 = scalar_select %p45, 0, %s44
      %s47 = sadd.s32 1, %s38
      %s48 = scalar_select %p45, %s47, %s38
      %p49 = scmp.ge.s32.totalorder %s48, 2
      %s50 = scalar_select %p49, 0, %s48
      %s51 = ssub.s32 %s38, %s50
      %p52 = scmp.eq.s32.totalorder %s51, 0
      %s54 = sadd.s32 %s53, 1
      %s55 = scalar_select %p52, %s53, %s54
      %p58 = pneg %p52
      %p59 = scmp.eq.s32.totalorder %s31, 1
      %p60 = por %p58, %p59
      %p61 = scmp.ne.s32.totalorder %s53, %s56
      %p62 = scmp.eq.s32.totalorder %s31, 0
      %p63 = por %p61, %p62
      %p64 = scmp.ne.s32.totalorder %s53, %s56
      %p65 = scmp.eq.s32.totalorder %s36, 1
      %p66 = por %p64, %p65
      %p67 = scmp.ne.s32.totalorder %s56, %s57
      %p68 = scmp.eq.s32.totalorder %s36, 0
      %p69 = por %p67, %p68
      %p70 = scmp.ne.s32.totalorder %s56, %s57
      %p71 = scmp.eq.s32.totalorder %s37, 1
      %p72 = por %p70, %p71
      %p74 = scmp.ne.s32.totalorder %s57, %s73
      %p75 = scmp.eq.s32.totalorder %s37, 0
      %p76 = por %p74, %p75
      %s78 = sadd.s32 %s77, 1
      %p81 = scmp.eq.s32.totalorder %s31, 1
      %p82 = scmp.ne.s32.totalorder %s77, %s79
      %p83 = scmp.eq.s32.totalorder %s31, 0
      %p84 = por %p82, %p83
      %p85 = scmp.ne.s32.totalorder %s77, %s79
      %p86 = scmp.eq.s32.totalorder %s36, 1
      %p87 = por %p85, %p86
      %p88 = scmp.ne.s32.totalorder %s79, %s80
      %p89 = scmp.eq.s32.totalorder %s36, 0
      %p90 = por %p88, %p89
      %p91 = scmp.ne.s32.totalorder %s79, %s80
      %p92 = scmp.eq.s32.totalorder %s37, 1
      %p93 = por %p91, %p92
      %p95 = scmp.ne.s32.totalorder %s80, %s94
      %p96 = scmp.eq.s32.totalorder %s37, 0
      %p97 = por %p95, %p96
      %s99 = sadd.s32 %s98, 1
      %p102 = scmp.eq.s32.totalorder %s31, 1
      %p103 = scmp.ne.s32.totalorder %s98, %s100
      %p104 = scmp.eq.s32.totalorder %s31, 0
      %p105 = por %p103, %p104
      %p106 = scmp.ne.s32.totalorder %s98, %s100
      %p107 = scmp.eq.s32.totalorder %s36, 1
      %p108 = por %p106, %p107
      %p109 = scmp.ne.s32.totalorder %s100, %s101
      %p110 = scmp.eq.s32.totalorder %s36, 0
      %p111 = por %p109, %p110
      %p112 = scmp.ne.s32.totalorder %s100, %s101
      %p113 = scmp.eq.s32.totalorder %s37, 1
      %p114 = por %p112, %p113
      %p116 = scmp.ne.s32.totalorder %s101, %s115
      %p117 = scmp.eq.s32.totalorder %s37, 0
      %p118 = por %p116, %p117
      %s120 = sadd.s32 %s119, 1
      %p123 = scmp.eq.s32.totalorder %s31, 1
      %p124 = scmp.ne.s32.totalorder %s119, %s121
      %p125 = scmp.eq.s32.totalorder %s31, 0
      %p126 = por %p124, %p125
      %p127 = scmp.ne.s32.totalorder %s119, %s121
      %p128 = scmp.eq.s32.totalorder %s36, 1
      %p129 = por %p127, %p128
      %p130 = scmp.ne.s32.totalorder %s121, %s122
      %p131 = scmp.eq.s32.totalorder %s36, 0
      %p132 = por %p130, %p131
      %p133 = scmp.ne.s32.totalorder %s121, %s122
      %p134 = scmp.eq.s32.totalorder %s37, 1
      %p135 = por %p133, %p134
      %p137 = scmp.ne.s32.totalorder %s122, %s136
      %p138 = scmp.eq.s32.totalorder %s37, 0
      %p139 = por %p137, %p138
      %s141 = sadd.s32 %s140, 1
      %p144 = scmp.eq.s32.totalorder %s31, 1
      %p145 = scmp.ne.s32.totalorder %s140, %s142
      %p146 = scmp.eq.s32.totalorder %s31, 0
      %p147 = por %p145, %p146
      %p148 = scmp.ne.s32.totalorder %s140, %s142
      %p149 = scmp.eq.s32.totalorder %s36, 1
      %p150 = por %p148, %p149
      %p151 = scmp.ne.s32.totalorder %s142, %s143
      %p152 = scmp.eq.s32.totalorder %s36, 0
      %p153 = por %p151, %p152
      %p154 = scmp.ne.s32.totalorder %s142, %s143
      %p155 = scmp.eq.s32.totalorder %s37, 1
      %p156 = por %p154, %p155
      %p158 = scmp.ne.s32.totalorder %s143, %s157
      %p159 = scmp.eq.s32.totalorder %s37, 0
      %p160 = por %p158, %p159
      %s162 = sadd.s32 %s161, 1
      %p165 = scmp.eq.s32.totalorder %s31, 1
      %p166 = scmp.ne.s32.totalorder %s161, %s163
      %p167 = scmp.eq.s32.totalorder %s31, 0
      %p168 = por %p166, %p167
      %p169 = scmp.ne.s32.totalorder %s161, %s163
      %p170 = scmp.eq.s32.totalorder %s36, 1
      %p171 = por %p169, %p170
      %p172 = scmp.ne.s32.totalorder %s163, %s164
      %p173 = scmp.eq.s32.totalorder %s36, 0
      %p174 = por %p172, %p173
      %p175 = scmp.ne.s32.totalorder %s163, %s164
      %p176 = scmp.eq.s32.totalorder %s37, 1
      %p177 = por %p175, %p176
      %p179 = scmp.ne.s32.totalorder %s164, %s178
      %p180 = scmp.eq.s32.totalorder %s37, 0
      %p181 = por %p179, %p180
      %s183 = sadd.s32 %s182, 1
      %p186 = scmp.eq.s32.totalorder %s31, 1
      %p187 = scmp.ne.s32.totalorder %s182, %s184
      %p188 = scmp.eq.s32.totalorder %s31, 0
      %p189 = por %p187, %p188
      %p190 = scmp.ne.s32.totalorder %s182, %s184
      %p191 = scmp.eq.s32.totalorder %s36, 1
      %p192 = por %p190, %p191
      %p193 = scmp.ne.s32.totalorder %s184, %s185
      %p194 = scmp.eq.s32.totalorder %s36, 0
      %p195 = por %p193, %p194
      %p196 = scmp.ne.s32.totalorder %s184, %s185
      %p197 = scmp.eq.s32.totalorder %s37, 1
      %p198 = por %p196, %p197
      %p200 = scmp.ne.s32.totalorder %s185, %s199
      %p201 = scmp.eq.s32.totalorder %s37, 0
      %p202 = por %p200, %p201
      %s204 = sadd.s32 %s203, 1
      %p207 = scmp.eq.s32.totalorder %s31, 1
      %p208 = scmp.ne.s32.totalorder %s203, %s205
      %p209 = scmp.eq.s32.totalorder %s31, 0
      %p210 = por %p208, %p209
      %p211 = scmp.ne.s32.totalorder %s203, %s205
      %p212 = scmp.eq.s32.totalorder %s36, 1
      %p213 = por %p211, %p212
      %p214 = scmp.ne.s32.totalorder %s205, %s206
      %p215 = scmp.eq.s32.totalorder %s36, 0
      %p216 = por %p214, %p215
      %p217 = scmp.ne.s32.totalorder %s205, %s206
      %p218 = scmp.eq.s32.totalorder %s37, 1
      %p219 = por %p217, %p218
      %p221 = scmp.ne.s32.totalorder %s206, %s220
      %p222 = scmp.eq.s32.totalorder %s37, 0
      %p223 = por %p221, %p222
      %s225 = sadd.s32 %s224, 1
      %p228 = scmp.eq.s32.totalorder %s31, 1
      %p229 = scmp.ne.s32.totalorder %s224, %s226
      %p230 = scmp.eq.s32.totalorder %s31, 0
      %p231 = por %p229, %p230
      %p232 = scmp.ne.s32.totalorder %s224, %s226
      %p233 = scmp.eq.s32.totalorder %s36, 1
      %p234 = por %p232, %p233
      %p235 = scmp.ne.s32.totalorder %s226, %s227
      %p236 = scmp.eq.s32.totalorder %s36, 0
      %p237 = por %p235, %p236
      %p238 = scmp.ne.s32.totalorder %s226, %s227
      %p239 = scmp.eq.s32.totalorder %s37, 1
      %p240 = por %p238, %p239
      %p242 = scmp.ne.s32.totalorder %s227, %s241
      %p243 = scmp.eq.s32.totalorder %s37, 0
      %p244 = por %p242, %p243
      %s246 = sadd.s32 %s245, 1
      %p249 = scmp.eq.s32.totalorder %s31, 1
      %p250 = scmp.ne.s32.totalorder %s245, %s247
      %p251 = scmp.eq.s32.totalorder %s31, 0
      %p252 = por %p250, %p251
      %p253 = scmp.ne.s32.totalorder %s245, %s247
      %p254 = scmp.eq.s32.totalorder %s36, 1
      %p255 = por %p253, %p254
      %p256 = scmp.ne.s32.totalorder %s247, %s248
      %p257 = scmp.eq.s32.totalorder %s36, 0
      %p258 = por %p256, %p257
      %p259 = scmp.ne.s32.totalorder %s247, %s248
      %p260 = scmp.eq.s32.totalorder %s37, 1
      %p261 = por %p259, %p260
      %p263 = scmp.ne.s32.totalorder %s248, %s262
      %p264 = scmp.eq.s32.totalorder %s37, 0
      %p265 = por %p263, %p264
      %s267 = sadd.s32 %s266, 1
      %p270 = scmp.eq.s32.totalorder %s31, 1
      %p271 = scmp.ne.s32.totalorder %s266, %s268
      %p272 = scmp.eq.s32.totalorder %s31, 0
      %p273 = por %p271, %p272
      %p274 = scmp.ne.s32.totalorder %s266, %s268
      %p275 = scmp.eq.s32.totalorder %s36, 1
      %p276 = por %p274, %p275
      %p277 = scmp.ne.s32.totalorder %s268, %s269
      %p278 = scmp.eq.s32.totalorder %s36, 0
      %p279 = por %p277, %p278
      %p280 = scmp.ne.s32.totalorder %s268, %s269
      %p281 = scmp.eq.s32.totalorder %s37, 1
      %p282 = por %p280, %p281
      %p284 = scmp.ne.s32.totalorder %s269, %s283
      %p285 = scmp.eq.s32.totalorder %s37, 0
      %p286 = por %p284, %p285
      %s288 = sadd.s32 %s287, 1
      %p291 = scmp.eq.s32.totalorder %s31, 1
      %p292 = scmp.ne.s32.totalorder %s287, %s289
      %p293 = scmp.eq.s32.totalorder %s31, 0
      %p294 = por %p292, %p293
      %p295 = scmp.ne.s32.totalorder %s287, %s289
      %p296 = scmp.eq.s32.totalorder %s36, 1
      %p297 = por %p295, %p296
      %p298 = scmp.ne.s32.totalorder %s289, %s290
      %p299 = scmp.eq.s32.totalorder %s36, 0
      %p300 = por %p298, %p299
      %p301 = scmp.ne.s32.totalorder %s289, %s290
      %p302 = scmp.eq.s32.totalorder %s37, 1
      %p303 = por %p301, %p302
      %p305 = scmp.ne.s32.totalorder %s290, %s304
      %p306 = scmp.eq.s32.totalorder %s37, 0
      %p307 = por %p305, %p306
      %s309 = sadd.s32 %s308, 1
      %p312 = scmp.eq.s32.totalorder %s31, 1
      %p313 = scmp.ne.s32.totalorder %s308, %s310
      %p314 = scmp.eq.s32.totalorder %s31, 0
      %p315 = por %p313, %p314
      %p316 = scmp.ne.s32.totalorder %s308, %s310
      %p317 = scmp.eq.s32.totalorder %s36, 1
      %p318 = por %p316, %p317
      %p319 = scmp.ne.s32.totalorder %s310, %s311
      %p320 = scmp.eq.s32.totalorder %s36, 0
      %p321 = por %p319, %p320
      %p322 = scmp.ne.s32.totalorder %s310, %s311
      %p323 = scmp.eq.s32.totalorder %s37, 1
      %p324 = por %p322, %p323
      %p326 = scmp.ne.s32.totalorder %s311, %s325
      %p327 = scmp.eq.s32.totalorder %s37, 0
      %p328 = por %p326, %p327
      %s330 = sadd.s32 %s329, 1
      %p333 = scmp.eq.s32.totalorder %s31, 1
      %p334 = scmp.ne.s32.totalorder %s329, %s331
      %p335 = scmp.eq.s32.totalorder %s31, 0
      %p336 = por %p334, %p335
      %p337 = scmp.ne.s32.totalorder %s329, %s331
      %p338 = scmp.eq.s32.totalorder %s36, 1
      %p339 = por %p337, %p338
      %p340 = scmp.ne.s32.totalorder %s331, %s332
      %p341 = scmp.eq.s32.totalorder %s36, 0
      %p342 = por %p340, %p341
      %p343 = scmp.ne.s32.totalorder %s331, %s332
      %p344 = scmp.eq.s32.totalorder %s37, 1
      %p345 = por %p343, %p344
      %p347 = scmp.ne.s32.totalorder %s332, %s346
      %p348 = scmp.eq.s32.totalorder %s37, 0
      %p349 = por %p347, %p348
      %s351 = sadd.s32 %s350, 1
      %p354 = scmp.eq.s32.totalorder %s31, 1
      %p355 = scmp.ne.s32.totalorder %s350, %s352
      %p356 = scmp.eq.s32.totalorder %s31, 0
      %p357 = por %p355, %p356
      %p358 = scmp.ne.s32.totalorder %s350, %s352
      %p359 = scmp.eq.s32.totalorder %s36, 1
      %p360 = por %p358, %p359
      %p361 = scmp.ne.s32.totalorder %s352, %s353
      %p362 = scmp.eq.s32.totalorder %s36, 0
      %p363 = por %p361, %p362
      %p364 = scmp.ne.s32.totalorder %s352, %s353
      %p365 = scmp.eq.s32.totalorder %s37, 1
      %p366 = por %p364, %p365
      %p368 = scmp.ne.s32.totalorder %s353, %s367
      %p369 = scmp.eq.s32.totalorder %s37, 0
      %p370 = por %p368, %p369
      %s372 = sadd.s32 %s371, 1
      %p375 = scmp.eq.s32.totalorder %s31, 1
      %p376 = scmp.ne.s32.totalorder %s371, %s373
      %p377 = scmp.eq.s32.totalorder %s31, 0
      %p378 = por %p376, %p377
      %p379 = scmp.ne.s32.totalorder %s371, %s373
      %p380 = scmp.eq.s32.totalorder %s36, 1
      %p381 = por %p379, %p380
      %p382 = scmp.ne.s32.totalorder %s373, %s374
      %p383 = scmp.eq.s32.totalorder %s36, 0
      %p384 = por %p382, %p383
      %p385 = scmp.ne.s32.totalorder %s373, %s374
      %p386 = scmp.eq.s32.totalorder %s37, 1
      %p387 = por %p385, %p386
      %p389 = scmp.ne.s32.totalorder %s374, %s388
      %p390 = scmp.eq.s32.totalorder %s37, 0
      %p391 = por %p389, %p390
      %s393 = sadd.s32 %s392, 1
      %p396 = scmp.eq.s32.totalorder %s31, 1
      %p397 = scmp.ne.s32.totalorder %s392, %s394
      %p398 = scmp.eq.s32.totalorder %s31, 0
      %p399 = por %p397, %p398
      %p400 = scmp.ne.s32.totalorder %s392, %s394
      %p401 = scmp.eq.s32.totalorder %s36, 1
      %p402 = por %p400, %p401
      %p403 = scmp.ne.s32.totalorder %s394, %s395
      %p404 = scmp.eq.s32.totalorder %s36, 0
      %p405 = por %p403, %p404
      %p406 = scmp.ne.s32.totalorder %s394, %s395
      %p407 = scmp.eq.s32.totalorder %s37, 1
      %p408 = por %p406, %p407
      %p410 = scmp.ne.s32.totalorder %s395, %s409
      %p411 = scmp.eq.s32.totalorder %s37, 0
      %p412 = por %p410, %p411
      %s413 = ssub.s32 %s38, %s50
      %s414 = ssub.s32 %s39, %s46
      %s415 = sor.u32 %s413, %s414
      %p416 = scmp.eq.s32.totalorder %s415, 0
      %s418 = sadd.s32 %s417, 1
      %s419 = scalar_select %p416, %s417, %s418
      %p422 = pneg %p416
      %p423 = scmp.eq.s32.totalorder %s31, 1
      %p424 = por %p422, %p423
      %p425 = scmp.ne.s32.totalorder %s417, %s420
      %p426 = scmp.eq.s32.totalorder %s31, 0
      %p427 = por %p425, %p426
      %p428 = scmp.ne.s32.totalorder %s417, %s420
      %p429 = scmp.eq.s32.totalorder %s36, 1
      %p430 = por %p428, %p429
      %p431 = scmp.ne.s32.totalorder %s420, %s421
      %p432 = scmp.eq.s32.totalorder %s36, 0
      %p433 = por %p431, %p432
      %p434 = scmp.ne.s32.totalorder %s420, %s421
      %p435 = scmp.eq.s32.totalorder %s37, 1
      %p436 = por %p434, %p435
      %p438 = scmp.ne.s32.totalorder %s421, %s437
      %p439 = scmp.eq.s32.totalorder %s37, 0
      %p440 = por %p438, %p439
      %s441 = ssub.s32 %s38, %s50
      %s442 = ssub.s32 %s39, %s46
      %s443 = sor.u32 %s441, %s442
      %p444 = scmp.eq.s32.totalorder %s443, 0
      %s446 = sadd.s32 %s445, 1
      %s447 = scalar_select %p444, %s445, %s446
      %p450 = pneg %p444
      %p451 = scmp.eq.s32.totalorder %s31, 1
      %p452 = por %p450, %p451
      %p453 = scmp.ne.s32.totalorder %s445, %s448
      %p454 = scmp.eq.s32.totalorder %s31, 0
      %p455 = por %p453, %p454
      %p456 = scmp.ne.s32.totalorder %s445, %s448
      %p457 = scmp.eq.s32.totalorder %s36, 1
      %p458 = por %p456, %p457
      %p459 = scmp.ne.s32.totalorder %s448, %s449
      %p460 = scmp.eq.s32.totalorder %s36, 0
      %p461 = por %p459, %p460
      %p462 = scmp.ne.s32.totalorder %s448, %s449
      %p463 = scmp.eq.s32.totalorder %s37, 1
      %p464 = por %p462, %p463
      %p466 = scmp.ne.s32.totalorder %s449, %s465
      %p467 = scmp.eq.s32.totalorder %s37, 0
      %p468 = por %p466, %p467
      %p469 = scmp.le.s32.totalorder 1, %s31
      %p470 = scmp.lt.s32.totalorder %s31, 3
      %p471 = pnand %p469, %p470
      %p472 = pneg %p471
      // Predicated region
      $region9: #{tpu_custom_call.1} parent=5 // pred_check
        _
      $region10: #{tpu_custom_call.1} parent=5 // pred_check_branch
        %474 = sbr.rel (%p471) target = $region12
      $region11: #{tpu_custom_call.1} parent=5 // pred_region
        %s475 = ssub.s32 %s31, 1
        // Predicated region
        $region13: #{tpu_custom_call.1} parent=11 // pred_check
          %p476 = pneg %p90
        $region14: #{tpu_custom_call.1} parent=11 // pred_check_branch
          %478 = sbr.rel (%p476) target = $region16
        $region15: #{tpu_custom_call.1} parent=11 // pred_region
          _
        $region16: #{tpu_custom_call.1} parent=11 // pred_fallthru
          _
        // Predicated region
        $region17: #{tpu_custom_call.1} parent=11 // pred_check
          %p479 = pneg %p111
        $region18: #{tpu_custom_call.1} parent=11 // pred_check_branch
          %481 = sbr.rel (%p479) target = $region20
        $region19: #{tpu_custom_call.1} parent=11 // pred_region
          _
        $region20: #{tpu_custom_call.1} parent=11 // pred_fallthru
          _
        // Predicated region
        $region21: #{tpu_custom_call.1} parent=11 // pred_check
          %p482 = pneg %p132
        $region22: #{tpu_custom_call.1} parent=11 // pred_check_branch
          %484 = sbr.rel (%p482) target = $region24
        $region23: #{tpu_custom_call.1} parent=11 // pred_region
          _
        $region24: #{tpu_custom_call.1} parent=11 // pred_fallthru
          _
        // Predicated region
        $region25: #{tpu_custom_call.1} parent=11 // pred_check
          %p485 = pneg %p153
        $region26: #{tpu_custom_call.1} parent=11 // pred_check_branch
          %487 = sbr.rel (%p485) target = $region28
        $region27: #{tpu_custom_call.1} parent=11 // pred_region
          _
        $region28: #{tpu_custom_call.1} parent=11 // pred_fallthru
          _
        // Predicated region
        $region29: #{tpu_custom_call.1} parent=11 // pred_check
          %p488 = pneg %p174
        $region30: #{tpu_custom_call.1} parent=11 // pred_check_branch
          %490 = sbr.rel (%p488) target = $region32
        $region31: #{tpu_custom_call.1} parent=11 // pred_region
          _
        $region32: #{tpu_custom_call.1} parent=11 // pred_fallthru
          _
        // Predicated region
        $region33: #{tpu_custom_call.1} parent=11 // pred_check
          %p491 = pneg %p195
        $region34: #{tpu_custom_call.1} parent=11 // pred_check_branch
          %493 = sbr.rel (%p491) target = $region36
        $region35: #{tpu_custom_call.1} parent=11 // pred_region
          _
        $region36: #{tpu_custom_call.1} parent=11 // pred_fallthru
          _
        // Predicated region
        $region37: #{tpu_custom_call.1} parent=11 // pred_check
          %p494 = pneg %p216
        $region38: #{tpu_custom_call.1} parent=11 // pred_check_branch
          %496 = sbr.rel (%p494) target = $region40
        $region39: #{tpu_custom_call.1} parent=11 // pred_region
          _
        $region40: #{tpu_custom_call.1} parent=11 // pred_fallthru
          _
        // Predicated region
        $region41: #{tpu_custom_call.1} parent=11 // pred_check
          %p497 = pneg %p237
        $region42: #{tpu_custom_call.1} parent=11 // pred_check_branch
          %499 = sbr.rel (%p497) target = $region44
        $region43: #{tpu_custom_call.1} parent=11 // pred_region
          _
        $region44: #{tpu_custom_call.1} parent=11 // pred_fallthru
          _
        // Predicated region
        $region45: #{tpu_custom_call.1} parent=11 // pred_check
          %p500 = pneg %p258
        $region46: #{tpu_custom_call.1} parent=11 // pred_check_branch
          %502 = sbr.rel (%p500) target = $region48
        $region47: #{tpu_custom_call.1} parent=11 // pred_region
          _
        $region48: #{tpu_custom_call.1} parent=11 // pred_fallthru
          _
        // Predicated region
        $region49: #{tpu_custom_call.1} parent=11 // pred_check
          %p503 = pneg %p279
        $region50: #{tpu_custom_call.1} parent=11 // pred_check_branch
          %505 = sbr.rel (%p503) target = $region52
        $region51: #{tpu_custom_call.1} parent=11 // pred_region
          _
        $region52: #{tpu_custom_call.1} parent=11 // pred_fallthru
          _
        // Predicated region
        $region53: #{tpu_custom_call.1} parent=11 // pred_check
          %p506 = pneg %p300
        $region54: #{tpu_custom_call.1} parent=11 // pred_check_branch
          %508 = sbr.rel (%p506) target = $region56
        $region55: #{tpu_custom_call.1} parent=11 // pred_region
          _
        $region56: #{tpu_custom_call.1} parent=11 // pred_fallthru
          _
        // Predicated region
        $region57: #{tpu_custom_call.1} parent=11 // pred_check
          %p509 = pneg %p321
        $region58: #{tpu_custom_call.1} parent=11 // pred_check_branch
          %511 = sbr.rel (%p509) target = $region60
        $region59: #{tpu_custom_call.1} parent=11 // pred_region
          _
        $region60: #{tpu_custom_call.1} parent=11 // pred_fallthru
          _
        // Predicated region
        $region61: #{tpu_custom_call.1} parent=11 // pred_check
          %p512 = pneg %p342
        $region62: #{tpu_custom_call.1} parent=11 // pred_check_branch
          %514 = sbr.rel (%p512) target = $region64
        $region63: #{tpu_custom_call.1} parent=11 // pred_region
          _
        $region64: #{tpu_custom_call.1} parent=11 // pred_fallthru
          _
        // Predicated region
        $region65: #{tpu_custom_call.1} parent=11 // pred_check
          %p515 = pneg %p363
        $region66: #{tpu_custom_call.1} parent=11 // pred_check_branch
          %517 = sbr.rel (%p515) target = $region68
        $region67: #{tpu_custom_call.1} parent=11 // pred_region
          _
        $region68: #{tpu_custom_call.1} parent=11 // pred_fallthru
          _
        // Predicated region
        $region69: #{tpu_custom_call.1} parent=11 // pred_check
          %p518 = pneg %p384
        $region70: #{tpu_custom_call.1} parent=11 // pred_check_branch
          %520 = sbr.rel (%p518) target = $region72
        $region71: #{tpu_custom_call.1} parent=11 // pred_region
          _
        $region72: #{tpu_custom_call.1} parent=11 // pred_fallthru
          _
        // Predicated region
        $region73: #{tpu_custom_call.1} parent=11 // pred_check
          %p521 = pneg %p405
        $region74: #{tpu_custom_call.1} parent=11 // pred_check_branch
          %523 = sbr.rel (%p521) target = $region76
        $region75: #{tpu_custom_call.1} parent=11 // pred_region
          _
        $region76: #{tpu_custom_call.1} parent=11 // pred_fallthru
          _
      $region12: #{tpu_custom_call.1} parent=5 // pred_fallthru
        _
      %p524 = scmp.lt.s32.totalorder %s31, 2
      // Predicated region
      $region77: #{tpu_custom_call.1} parent=5 // pred_check
        %p525 = pneg %p524
      $region78: #{tpu_custom_call.1} parent=5 // pred_check_branch
        %527 = sbr.rel (%p525) target = $region80
      $region79: #{tpu_custom_call.1} parent=5 // pred_region
        // Predicated region
        $region81: #{tpu_custom_call.1} parent=79 // pred_check
          %p528 = pneg %p63
        $region82: #{tpu_custom_call.1} parent=79 // pred_check_branch
          %530 = sbr.rel (%p528) target = $region84
        $region83: #{tpu_custom_call.1} parent=79 // pred_region
          %p531 = scmp.lt.s32.totalorder %s38, 1
          %s532 = scalar_select %p531, %s38, 1
          %s533 = smul.addr %s532, 4
          %s534 = scalar_lea.vmem %s0, %s533
        $region84: #{tpu_custom_call.1} parent=79 // pred_fallthru
          _
      $region80: #{tpu_custom_call.1} parent=5 // pred_fallthru
        _
      %p535 = scmp.le.s32.totalorder 1, %s31
      %p536 = scmp.lt.s32.totalorder %s31, 3
      %p537 = pnand %p535, %p536
      %p538 = pneg %p537
      // Predicated region
      $region85: #{tpu_custom_call.1} parent=5 // pred_check
        _
      $region86: #{tpu_custom_call.1} parent=5 // pred_check_branch
        %540 = sbr.rel (%p537) target = $region88
      $region87: #{tpu_custom_call.1} parent=5 // pred_region
        %s541 = ssub.s32 %s31, 1
        %p542 = scmp.lt.s32.totalorder %s40, 1
        %s543 = scalar_select %p542, %s40, 1
        %s544 = smul.addr %s543, 4
        %s545 = scalar_lea.vmem %s0, %s544
        %p546 = pneg %p69
        %p547 = pneg %p66
        %p548 = pneg %p90
        %p549 = pneg %p87
        %p550 = pneg %p111
        %p551 = pneg %p108
        %p552 = pneg %p132
        %p553 = pneg %p129
        %p554 = pneg %p153
        %p555 = pneg %p150
        %p556 = pneg %p174
        %p557 = pneg %p171
        %p558 = pneg %p195
        %p559 = pneg %p192
        %p560 = pneg %p216
        %p561 = pneg %p213
        %p562 = pneg %p237
        %p563 = pneg %p234
        %p564 = pneg %p258
        %p565 = pneg %p255
        %p566 = pneg %p279
        %p567 = pneg %p276
        %p568 = pneg %p300
        %p569 = pneg %p297
        %p570 = pneg %p321
        %p571 = pneg %p318
        %p572 = pneg %p342
        %p573 = pneg %p339
        %p574 = pneg %p363
        %p575 = pneg %p360
        %p576 = pneg %p384
        %p577 = pneg %p381
        %p578 = pneg %p405
        %p579 = pneg %p402
        %p580 = pneg %p433
        %p581 = pneg %p430
        %s582 = sand.u32 %s420, 1
        %s583 = scalar_lea.sflag [#allocation3], %s582
        %s584 = sand.u32 %s420, 1
        %s585 = smul.addr %s584, 8
        %s586 = scalar_lea.vmem [#allocation2], %s585
        %p587 = pneg %p461
        %p588 = pneg %p458
        %s589 = sand.u32 %s448, 1
        %s590 = scalar_lea.sflag [#allocation5], %s589
        %s591 = sand.u32 %s448, 1
        %s592 = smul.addr %s591, 32
        %s593 = scalar_lea.vmem [#allocation4], %s592
        %p594 = scmp.lt.s32.totalorder %s40, 1
        %s595 = scalar_select %p594, %s40, 1
        %s596 = smul.addr %s595, 4
        %s597 = scalar_lea.vmem %s0, %s596
        %v599 = vld [vmem:[%s597] sm:$0xf]
        %v600 = vld [vmem:[%s3] sm:$0xf]
        %v601 = vld [vmem:[%s3 + $0x4] sm:$0xf]
        %v602 = vld [vmem:[%s3 + $0x8] sm:$0xf]
        %v603 = vld [vmem:[%s3 + $0xc] sm:$0xf]
        %v604 = vld [vmem:[%s3 + $0x10] sm:$0xf]
        %v605 = vld [vmem:[%s3 + $0x14] sm:$0xf]
        %v606 = vld [vmem:[%s3 + $0x18] sm:$0xf]
        %v607 = vld [vmem:[%s3 + $0x1c] sm:$0xf]
        %v608 = vld [vmem:[%s3 + $0x20] sm:$0xf]
        %v609 = vld [vmem:[%s3 + $0x24] sm:$0xf]
        %v610 = vld [vmem:[%s3 + $0x28] sm:$0xf]
        %v611 = vld [vmem:[%s3 + $0x2c] sm:$0xf]
        %v612 = vld [vmem:[%s3 + $0x30] sm:$0xf]
        %v613 = vld [vmem:[%s3 + $0x34] sm:$0xf]
        %v614 = vld [vmem:[%s3 + $0x38] sm:$0xf]
        %v615 = vld [vmem:[%s3 + $0x3c] sm:$0xf]
        %v616 = vld [vmem:[%s4] sm:$0x1]
        %v617 = vld [vmem:[%s4 + $0x1] sm:$0x1]
        %v618 = vld [vmem:[%s4 + $0x2] sm:$0x1]
        %v619 = vld [vmem:[%s4 + $0x3] sm:$0x1]
        %v624 = vlaneseq
        %v625 = vshrl.u32 %v624, 7
        %v626 = vsub.s32 0, %v625
        %v627 = vrot.slane %v616, %v626
        %v628 = vlaneseq
        %v629 = vshrl.u32 %v628, 7
        %v630 = vsub.s32 0, %v629
        %v631 = vrot.slane %v617, %v630
        %v632 = vlaneseq
        %v633 = vshrl.u32 %v632, 7
        %v634 = vsub.s32 0, %v633
        %v635 = vrot.slane %v618, %v634
        %v636 = vlaneseq
        %v637 = vshrl.u32 %v636, 7
        %v638 = vsub.s32 0, %v637
        %v639 = vrot.slane %v619, %v638
        %v648 = vunpack.c.l.b16 %v600
        %v649 = vunpack.c.l.b16 %v601
        %v650 = vunpack.c.l.b16 %v602
        %v651 = vunpack.c.l.b16 %v603
        %v652 = vpack.c.b16 %v649, %v648
        %v653 = vpack.c.b16 %v651, %v650
        %vm656 = vcmask 261120
        %v658 = vsel %vm656, %v599, 0
        %660 = vmatprep.subr.bf16.mxu0 0
        %661 = vmatpush1.bf16.msra.mxu0 %v652
        %662 = vmatprep.subr.bf16.mxu0 0
        %663 = vmatpush1.bf16.msra.mxu0 %v653
        %664 = vmatprep.subr.bf16.mxu0 0
        %665 = vmatpush1.bf16.msra.mxu0 0
        %666 = vmatprep.subr.bf16.mxu0 0
        %667 = vmatpush1.bf16.msra.mxu0 0
        %668 = vmatprep.subr.bf16.mxu0 0
        %669 = vmatpush1.bf16.msra.mxu0 0
        %670 = vmatprep.subr.bf16.mxu0 0
        %671 = vmatpush1.bf16.msra.mxu0 0
        %672 = vmatprep.subr.bf16.mxu0 0
        %673 = vmatpush1.bf16.msra.mxu0 0
        %674 = vmatprep.subr.bf16.mxu0 0
        %675 = vmatpush1.bf16.msra.mxu0 0
        %676 = vmatprep.subr.bf16.mxu0 0
        %677 = vmatpush1.bf16.msra.mxu0 0
        %678 = vmatprep.subr.bf16.mxu0 0
        %679 = vmatpush1.bf16.msra.mxu0 0
        %680 = vmatprep.subr.bf16.mxu0 0
        %681 = vmatpush1.bf16.msra.mxu0 0
        %682 = vmatprep.subr.bf16.mxu0 0
        %683 = vmatpush1.bf16.msra.mxu0 0
        %684 = vmatprep.subr.bf16.mxu0 0
        %685 = vmatpush1.bf16.msra.mxu0 0
        %686 = vmatprep.subr.bf16.mxu0 0
        %687 = vmatpush1.bf16.msra.mxu0 0
        %688 = vmatprep.subr.bf16.mxu0 0
        %689 = vmatpush1.bf16.msra.mxu0 0
        %690 = vmatprep.subr.bf16.mxu0 0
        %691 = vmatpush1.bf16.msra.mxu0 0
        %692 = vmatprep.mubr.bf16.mxu0 0
        %693 = vmatmul.mubr.bf16.gmra.mrb[0].mxu0 %v658
        %v694 = vpop.f32.mrb[0].mxu0
        %v695 = vadd.f32 %v627, %v694
        %v696 = vpop.f32.mrb[0].mxu0
        %v697 = vpop.f32.mrb[0].mxu0
        %v698 = vpop.f32.mrb[0].mxu0
        %699 = vdwg.mxu0
        %v704 = vunpack.c.l.b16 %v604
        %v705 = vunpack.c.l.b16 %v605
        %v706 = vunpack.c.l.b16 %v606
        %v707 = vunpack.c.l.b16 %v607
        %v708 = vpack.c.b16 %v705, %v704
        %v709 = vpack.c.b16 %v707, %v706
        %712 = vmatprep.subr.bf16.mxu0 0
        %713 = vmatpush1.bf16.msra.mxu0 %v708
        %714 = vmatprep.subr.bf16.mxu0 0
        %715 = vmatpush1.bf16.msra.mxu0 %v709
        %716 = vmatprep.subr.bf16.mxu0 0
        %717 = vmatpush1.bf16.msra.mxu0 0
        %718 = vmatprep.subr.bf16.mxu0 0
        %719 = vmatpush1.bf16.msra.mxu0 0
        %720 = vmatprep.subr.bf16.mxu0 0
        %721 = vmatpush1.bf16.msra.mxu0 0
        %722 = vmatprep.subr.bf16.mxu0 0
        %723 = vmatpush1.bf16.msra.mxu0 0
        %724 = vmatprep.subr.bf16.mxu0 0
        %725 = vmatpush1.bf16.msra.mxu0 0
        %726 = vmatprep.subr.bf16.mxu0 0
        %727 = vmatpush1.bf16.msra.mxu0 0
        %728 = vmatprep.subr.bf16.mxu0 0
        %729 = vmatpush1.bf16.msra.mxu0 0
        %730 = vmatprep.subr.bf16.mxu0 0
        %731 = vmatpush1.bf16.msra.mxu0 0
        %732 = vmatprep.subr.bf16.mxu0 0
        %733 = vmatpush1.bf16.msra.mxu0 0
        %734 = vmatprep.subr.bf16.mxu0 0
        %735 = vmatpush1.bf16.msra.mxu0 0
        %736 = vmatprep.subr.bf16.mxu0 0
        %737 = vmatpush1.bf16.msra.mxu0 0
        %738 = vmatprep.subr.bf16.mxu0 0
        %739 = vmatpush1.bf16.msra.mxu0 0
        %740 = vmatprep.subr.bf16.mxu0 0
        %741 = vmatpush1.bf16.msra.mxu0 0
        %742 = vmatprep.subr.bf16.mxu0 0
        %743 = vmatpush1.bf16.msra.mxu0 0
        %744 = vmatprep.mubr.bf16.mxu0 0
        %745 = vmatmul.mubr.bf16.gmra.mrb[0].mxu0 %v658
        %v746 = vpop.f32.mrb[0].mxu0
        %v747 = vadd.f32 %v631, %v746
        %v748 = vpop.f32.mrb[0].mxu0
        %v749 = vpop.f32.mrb[0].mxu0
        %v750 = vpop.f32.mrb[0].mxu0
        %751 = vdwg.mxu0
        %v756 = vunpack.c.l.b16 %v608
        %v757 = vunpack.c.l.b16 %v609
        %v758 = vunpack.c.l.b16 %v610
        %v759 = vunpack.c.l.b16 %v611
        %v760 = vpack.c.b16 %v757, %v756
        %v761 = vpack.c.b16 %v759, %v758
        %764 = vmatprep.subr.bf16.mxu0 0
        %765 = vmatpush1.bf16.msra.mxu0 %v760
        %766 = vmatprep.subr.bf16.mxu0 0
        %767 = vmatpush1.bf16.msra.mxu0 %v761
        %768 = vmatprep.subr.bf16.mxu0 0
        %769 = vmatpush1.bf16.msra.mxu0 0
        %770 = vmatprep.subr.bf16.mxu0 0
        %771 = vmatpush1.bf16.msra.mxu0 0
        %772 = vmatprep.subr.bf16.mxu0 0
        %773 = vmatpush1.bf16.msra.mxu0 0
        %774 = vmatprep.subr.bf16.mxu0 0
        %775 = vmatpush1.bf16.msra.mxu0 0
        %776 = vmatprep.subr.bf16.mxu0 0
        %777 = vmatpush1.bf16.msra.mxu0 0
        %778 = vmatprep.subr.bf16.mxu0 0
        %779 = vmatpush1.bf16.msra.mxu0 0
        %780 = vmatprep.subr.bf16.mxu0 0
        %781 = vmatpush1.bf16.msra.mxu0 0
        %782 = vmatprep.subr.bf16.mxu0 0
        %783 = vmatpush1.bf16.msra.mxu0 0
        %784 = vmatprep.subr.bf16.mxu0 0
        %785 = vmatpush1.bf16.msra.mxu0 0
        %786 = vmatprep.subr.bf16.mxu0 0
        %787 = vmatpush1.bf16.msra.mxu0 0
        %788 = vmatprep.subr.bf16.mxu0 0
        %789 = vmatpush1.bf16.msra.mxu0 0
        %790 = vmatprep.subr.bf16.mxu0 0
        %791 = vmatpush1.bf16.msra.mxu0 0
        %792 = vmatprep.subr.bf16.mxu0 0
        %793 = vmatpush1.bf16.msra.mxu0 0
        %794 = vmatprep.subr.bf16.mxu0 0
        %795 = vmatpush1.bf16.msra.mxu0 0
        %796 = vmatprep.mubr.bf16.mxu0 0
        %797 = vmatmul.mubr.bf16.gmra.mrb[0].mxu0 %v658
        %v798 = vpop.f32.mrb[0].mxu0
        %v799 = vadd.f32 %v635, %v798
        %v800 = vpop.f32.mrb[0].mxu0
        %v801 = vpop.f32.mrb[0].mxu0
        %v802 = vpop.f32.mrb[0].mxu0
        %803 = vdwg.mxu0
        %v808 = vunpack.c.l.b16 %v612
        %v809 = vunpack.c.l.b16 %v613
        %v810 = vunpack.c.l.b16 %v614
        %v811 = vunpack.c.l.b16 %v615
        %v812 = vpack.c.b16 %v809, %v808
        %v813 = vpack.c.b16 %v811, %v810
        %816 = vmatprep.subr.bf16.mxu0 0
        %817 = vmatpush1.bf16.msra.mxu0 %v812
        %818 = vmatprep.subr.bf16.mxu0 0
        %819 = vmatpush1.bf16.msra.mxu0 %v813
        %820 = vmatprep.subr.bf16.mxu0 0
        %821 = vmatpush1.bf16.msra.mxu0 0
        %822 = vmatprep.subr.bf16.mxu0 0
        %823 = vmatpush1.bf16.msra.mxu0 0
        %824 = vmatprep.subr.bf16.mxu0 0
        %825 = vmatpush1.bf16.msra.mxu0 0
        %826 = vmatprep.subr.bf16.mxu0 0
        %827 = vmatpush1.bf16.msra.mxu0 0
        %828 = vmatprep.subr.bf16.mxu0 0
        %829 = vmatpush1.bf16.msra.mxu0 0
        %830 = vmatprep.subr.bf16.mxu0 0
        %831 = vmatpush1.bf16.msra.mxu0 0
        %832 = vmatprep.subr.bf16.mxu0 0
        %833 = vmatpush1.bf16.msra.mxu0 0
        %834 = vmatprep.subr.bf16.mxu0 0
        %835 = vmatpush1.bf16.msra.mxu0 0
        %836 = vmatprep.subr.bf16.mxu0 0
        %837 = vmatpush1.bf16.msra.mxu0 0
        %838 = vmatprep.subr.bf16.mxu0 0
        %839 = vmatpush1.bf16.msra.mxu0 0
        %840 = vmatprep.subr.bf16.mxu0 0
        %841 = vmatpush1.bf16.msra.mxu0 0
        %842 = vmatprep.subr.bf16.mxu0 0
        %843 = vmatpush1.bf16.msra.mxu0 0
        %844 = vmatprep.subr.bf16.mxu0 0
        %845 = vmatpush1.bf16.msra.mxu0 0
        %846 = vmatprep.subr.bf16.mxu0 0
        %847 = vmatpush1.bf16.msra.mxu0 0
        %848 = vmatprep.mubr.bf16.mxu0 0
        %849 = vmatmul.mubr.bf16.gmra.mrb[0].mxu0 %v658
        %v850 = vpop.f32.mrb[0].mxu0
        %v851 = vadd.f32 %v639, %v850
        %v852 = vpop.f32.mrb[0].mxu0
        %v853 = vpop.f32.mrb[0].mxu0
        %v854 = vpop.f32.mrb[0].mxu0
        %855 = vdwg.mxu0
        %v856 = vld [vmem:[%s5] sm:$0xf]
        %v857 = vld [vmem:[%s5 + $0x4] sm:$0xf]
        %v858 = vld [vmem:[%s5 + $0x8] sm:$0xf]
        %v859 = vld [vmem:[%s5 + $0xc] sm:$0xf]
        %v860 = vld [vmem:[%s5 + $0x10] sm:$0xf]
        %v861 = vld [vmem:[%s5 + $0x14] sm:$0xf]
        %v862 = vld [vmem:[%s5 + $0x18] sm:$0xf]
        %v863 = vld [vmem:[%s5 + $0x1c] sm:$0xf]
        %v864 = vld [vmem:[%s5 + $0x20] sm:$0xf]
        %v865 = vld [vmem:[%s5 + $0x24] sm:$0xf]
        %v866 = vld [vmem:[%s5 + $0x28] sm:$0xf]
        %v867 = vld [vmem:[%s5 + $0x2c] sm:$0xf]
        %v868 = vld [vmem:[%s5 + $0x30] sm:$0xf]
        %v869 = vld [vmem:[%s5 + $0x34] sm:$0xf]
        %v870 = vld [vmem:[%s5 + $0x38] sm:$0xf]
        %v871 = vld [vmem:[%s5 + $0x3c] sm:$0xf]
        %v872 = vld [vmem:[%s6] sm:$0x1]
        %v873 = vld [vmem:[%s6 + $0x1] sm:$0x1]
        %v874 = vld [vmem:[%s6 + $0x2] sm:$0x1]
        %v875 = vld [vmem:[%s6 + $0x3] sm:$0x1]
        %v880 = vlaneseq
        %v881 = vshrl.u32 %v880, 7
        %v882 = vsub.s32 0, %v881
        %v883 = vrot.slane %v872, %v882
        %v884 = vlaneseq
        %v885 = vshrl.u32 %v884, 7
        %v886 = vsub.s32 0, %v885
        %v887 = vrot.slane %v873, %v886
        %v888 = vlaneseq
        %v889 = vshrl.u32 %v888, 7
        %v890 = vsub.s32 0, %v889
        %v891 = vrot.slane %v874, %v890
        %v892 = vlaneseq
        %v893 = vshrl.u32 %v892, 7
        %v894 = vsub.s32 0, %v893
        %v895 = vrot.slane %v875, %v894
        %v904 = vunpack.c.l.b16 %v856
        %v905 = vunpack.c.l.b16 %v857
        %v906 = vunpack.c.l.b16 %v858
        %v907 = vunpack.c.l.b16 %v859
        %v908 = vpack.c.b16 %v905, %v904
        %v909 = vpack.c.b16 %v907, %v906
        %912 = vmatprep.subr.bf16.mxu0 0
        %913 = vmatpush1.bf16.msra.mxu0 %v908
        %914 = vmatprep.subr.bf16.mxu0 0
        %915 = vmatpush1.bf16.msra.mxu0 %v909
        %916 = vmatprep.subr.bf16.mxu0 0
        %917 = vmatpush1.bf16.msra.mxu0 0
        %918 = vmatprep.subr.bf16.mxu0 0
        %919 = vmatpush1.bf16.msra.mxu0 0
        %920 = vmatprep.subr.bf16.mxu0 0
        %921 = vmatpush1.bf16.msra.mxu0 0
        %922 = vmatprep.subr.bf16.mxu0 0
        %923 = vmatpush1.bf16.msra.mxu0 0
        %924 = vmatprep.subr.bf16.mxu0 0
        %925 = vmatpush1.bf16.msra.mxu0 0
        %926 = vmatprep.subr.bf16.mxu0 0
        %927 = vmatpush1.bf16.msra.mxu0 0
        %928 = vmatprep.subr.bf16.mxu0 0
        %929 = vmatpush1.bf16.msra.mxu0 0
        %930 = vmatprep.subr.bf16.mxu0 0
        %931 = vmatpush1.bf16.msra.mxu0 0
        %932 = vmatprep.subr.bf16.mxu0 0
        %933 = vmatpush1.bf16.msra.mxu0 0
        %934 = vmatprep.subr.bf16.mxu0 0
        %935 = vmatpush1.bf16.msra.mxu0 0
        %936 = vmatprep.subr.bf16.mxu0 0
        %937 = vmatpush1.bf16.msra.mxu0 0
        %938 = vmatprep.subr.bf16.mxu0 0
        %939 = vmatpush1.bf16.msra.mxu0 0
        %940 = vmatprep.subr.bf16.mxu0 0
        %941 = vmatpush1.bf16.msra.mxu0 0
        %942 = vmatprep.subr.bf16.mxu0 0
        %943 = vmatpush1.bf16.msra.mxu0 0
        %944 = vmatprep.mubr.bf16.mxu0 0
        %945 = vmatmul.mubr.bf16.gmra.mrb[0].mxu0 %v658
        %v946 = vpop.f32.mrb[0].mxu0
        %v947 = vadd.f32 %v883, %v946
        %v948 = vpop.f32.mrb[0].mxu0
        %v949 = vpop.f32.mrb[0].mxu0
        %v950 = vpop.f32.mrb[0].mxu0
        %951 = vdwg.mxu0
        %v956 = vunpack.c.l.b16 %v860
        %v957 = vunpack.c.l.b16 %v861
        %v958 = vunpack.c.l.b16 %v862
        %v959 = vunpack.c.l.b16 %v863
        %v960 = vpack.c.b16 %v957, %v956
        %v961 = vpack.c.b16 %v959, %v958
        %964 = vmatprep.subr.bf16.mxu0 0
        %965 = vmatpush1.bf16.msra.mxu0 %v960
        %966 = vmatprep.subr.bf16.mxu0 0
        %967 = vmatpush1.bf16.msra.mxu0 %v961
        %968 = vmatprep.subr.bf16.mxu0 0
        %969 = vmatpush1.bf16.msra.mxu0 0
        %970 = vmatprep.subr.bf16.mxu0 0
        %971 = vmatpush1.bf16.msra.mxu0 0
        %972 = vmatprep.subr.bf16.mxu0 0
        %973 = vmatpush1.bf16.msra.mxu0 0
        %974 = vmatprep.subr.bf16.mxu0 0
        %975 = vmatpush1.bf16.msra.mxu0 0
        %976 = vmatprep.subr.bf16.mxu0 0
        %977 = vmatpush1.bf16.msra.mxu0 0
        %978 = vmatprep.subr.bf16.mxu0 0
        %979 = vmatpush1.bf16.msra.mxu0 0
        %980 = vmatprep.subr.bf16.mxu0 0
        %981 = vmatpush1.bf16.msra.mxu0 0
        %982 = vmatprep.subr.bf16.mxu0 0
        %983 = vmatpush1.bf16.msra.mxu0 0
        %984 = vmatprep.subr.bf16.mxu0 0
        %985 = vmatpush1.bf16.msra.mxu0 0
        %986 = vmatprep.subr.bf16.mxu0 0
        %987 = vmatpush1.bf16.msra.mxu0 0
        %988 = vmatprep.subr.bf16.mxu0 0
        %989 = vmatpush1.bf16.msra.mxu0 0
        %990 = vmatprep.subr.bf16.mxu0 0
        %991 = vmatpush1.bf16.msra.mxu0 0
        %992 = vmatprep.subr.bf16.mxu0 0
        %993 = vmatpush1.bf16.msra.mxu0 0
        %994 = vmatprep.subr.bf16.mxu0 0
        %995 = vmatpush1.bf16.msra.mxu0 0
        %996 = vmatprep.mubr.bf16.mxu0 0
        %997 = vmatmul.mubr.bf16.gmra.mrb[0].mxu0 %v658
        %v998 = vpop.f32.mrb[0].mxu0
        %v999 = vadd.f32 %v887, %v998
        %v1000 = vpop.f32.mrb[0].mxu0
        %v1001 = vpop.f32.mrb[0].mxu0
        %v1002 = vpop.f32.mrb[0].mxu0
        %1003 = vdwg.mxu0
        %v1008 = vunpack.c.l.b16 %v864
        %v1009 = vunpack.c.l.b16 %v865
        %v1010 = vunpack.c.l.b16 %v866
        %v1011 = vunpack.c.l.b16 %v867
        %v1012 = vpack.c.b16 %v1009, %v1008
        %v1013 = vpack.c.b16 %v1011, %v1010
        %1016 = vmatprep.subr.bf16.mxu0 0
        %1017 = vmatpush1.bf16.msra.mxu0 %v1012
        %1018 = vmatprep.subr.bf16.mxu0 0
        %1019 = vmatpush1.bf16.msra.mxu0 %v1013
        %1020 = vmatprep.subr.bf16.mxu0 0
        %1021 = vmatpush1.bf16.msra.mxu0 0
        %1022 = vmatprep.subr.bf16.mxu0 0
        %1023 = vmatpush1.bf16.msra.mxu0 0
        %1024 = vmatprep.subr.bf16.mxu0 0
        %1025 = vmatpush1.bf16.msra.mxu0 0
        %1026 = vmatprep.subr.bf16.mxu0 0
        %1027 = vmatpush1.bf16.msra.mxu0 0
        %1028 = vmatprep.subr.bf16.mxu0 0
        %1029 = vmatpush1.bf16.msra.mxu0 0
        %1030 = vmatprep.subr.bf16.mxu0 0
        %1031 = vmatpush1.bf16.msra.mxu0 0
        %1032 = vmatprep.subr.bf16.mxu0 0
        %1033 = vmatpush1.bf16.msra.mxu0 0
        %1034 = vmatprep.subr.bf16.mxu0 0
        %1035 = vmatpush1.bf16.msra.mxu0 0
        %1036 = vmatprep.subr.bf16.mxu0 0
        %1037 = vmatpush1.bf16.msra.mxu0 0
        %1038 = vmatprep.subr.bf16.mxu0 0
        %1039 = vmatpush1.bf16.msra.mxu0 0
        %1040 = vmatprep.subr.bf16.mxu0 0
        %1041 = vmatpush1.bf16.msra.mxu0 0
        %1042 = vmatprep.subr.bf16.mxu0 0
        %1043 = vmatpush1.bf16.msra.mxu0 0
        %1044 = vmatprep.subr.bf16.mxu0 0
        %1045 = vmatpush1.bf16.msra.mxu0 0
        %1046 = vmatprep.subr.bf16.mxu0 0
        %1047 = vmatpush1.bf16.msra.mxu0 0
        %1048 = vmatprep.mubr.bf16.mxu0 0
        %1049 = vmatmul.mubr.bf16.gmra.mrb[0].mxu0 %v658
        %v1050 = vpop.f32.mrb[0].mxu0
        %v1051 = vadd.f32 %v891, %v1050
        %v1052 = vpop.f32.mrb[0].mxu0
        %v1053 = vpop.f32.mrb[0].mxu0
        %v1054 = vpop.f32.mrb[0].mxu0
        %1055 = vdwg.mxu0
        %v1060 = vunpack.c.l.b16 %v868
        %v1061 = vunpack.c.l.b16 %v869
        %v1062 = vunpack.c.l.b16 %v870
        %v1063 = vunpack.c.l.b16 %v871
        %v1064 = vpack.c.b16 %v1061, %v1060
        %v1065 = vpack.c.b16 %v1063, %v1062
        %1068 = vmatprep.subr.bf16.mxu0 0
        %1069 = vmatpush1.bf16.msra.mxu0 %v1064
        %1070 = vmatprep.subr.bf16.mxu0 0
        %1071 = vmatpush1.bf16.msra.mxu0 %v1065
        %1072 = vmatprep.subr.bf16.mxu0 0
        %1073 = vmatpush1.bf16.msra.mxu0 0
        %1074 = vmatprep.subr.bf16.mxu0 0
        %1075 = vmatpush1.bf16.msra.mxu0 0
        %1076 = vmatprep.subr.bf16.mxu0 0
        %1077 = vmatpush1.bf16.msra.mxu0 0
        %1078 = vmatprep.subr.bf16.mxu0 0
        %1079 = vmatpush1.bf16.msra.mxu0 0
        %1080 = vmatprep.subr.bf16.mxu0 0
        %1081 = vmatpush1.bf16.msra.mxu0 0
        %1082 = vmatprep.subr.bf16.mxu0 0
        %1083 = vmatpush1.bf16.msra.mxu0 0
        %1084 = vmatprep.subr.bf16.mxu0 0
        %1085 = vmatpush1.bf16.msra.mxu0 0
        %1086 = vmatprep.subr.bf16.mxu0 0
        %1087 = vmatpush1.bf16.msra.mxu0 0
        %1088 = vmatprep.subr.bf16.mxu0 0
        %1089 = vmatpush1.bf16.msra.mxu0 0
        %1090 = vmatprep.subr.bf16.mxu0 0
        %1091 = vmatpush1.bf16.msra.mxu0 0
        %1092 = vmatprep.subr.bf16.mxu0 0
        %1093 = vmatpush1.bf16.msra.mxu0 0
        %1094 = vmatprep.subr.bf16.mxu0 0
        %1095 = vmatpush1.bf16.msra.mxu0 0
        %1096 = vmatprep.subr.bf16.mxu0 0
        %1097 = vmatpush1.bf16.msra.mxu0 0
        %1098 = vmatprep.subr.bf16.mxu0 0
        %1099 = vmatpush1.bf16.msra.mxu0 0
        %1100 = vmatprep.mubr.bf16.mxu0 0
        %1101 = vmatmul.mubr.bf16.gmra.mrb[0].mxu0 %v658
        %v1102 = vpop.f32.mrb[0].mxu0
        %v1103 = vadd.f32 %v895, %v1102
        %v1104 = vpop.f32.mrb[0].mxu0
        %v1105 = vpop.f32.mrb[0].mxu0
        %v1106 = vpop.f32.mrb[0].mxu0
        %1107 = vdwg.mxu0
        %v1108 = vld [vmem:[%s1] sm:$0xf]
        %v1109 = vld [vmem:[%s1 + $0x4] sm:$0xf]
        %v1110 = vld [vmem:[%s1 + $0x8] sm:$0xf]
        %v1111 = vld [vmem:[%s1 + $0xc] sm:$0xf]
        %v1112 = vld [vmem:[%s1 + $0x10] sm:$0xf]
        %v1113 = vld [vmem:[%s1 + $0x14] sm:$0xf]
        %v1114 = vld [vmem:[%s1 + $0x18] sm:$0xf]
        %v1115 = vld [vmem:[%s1 + $0x1c] sm:$0xf]
        %v1116 = vld [vmem:[%s1 + $0x20] sm:$0xf]
        %v1117 = vld [vmem:[%s1 + $0x24] sm:$0xf]
        %v1118 = vld [vmem:[%s1 + $0x28] sm:$0xf]
        %v1119 = vld [vmem:[%s1 + $0x2c] sm:$0xf]
        %v1120 = vld [vmem:[%s1 + $0x30] sm:$0xf]
        %v1121 = vld [vmem:[%s1 + $0x34] sm:$0xf]
        %v1122 = vld [vmem:[%s1 + $0x38] sm:$0xf]
        %v1123 = vld [vmem:[%s1 + $0x3c] sm:$0xf]
        %v1124 = vld [vmem:[%s2] sm:$0x1]
        %v1125 = vld [vmem:[%s2 + $0x1] sm:$0x1]
        %v1126 = vld [vmem:[%s2 + $0x2] sm:$0x1]
        %v1127 = vld [vmem:[%s2 + $0x3] sm:$0x1]
        %v1132 = vlaneseq
        %v1133 = vshrl.u32 %v1132, 7
        %v1134 = vsub.s32 0, %v1133
        %v1135 = vrot.slane %v1124, %v1134
        %v1136 = vlaneseq
        %v1137 = vshrl.u32 %v1136, 7
        %v1138 = vsub.s32 0, %v1137
        %v1139 = vrot.slane %v1125, %v1138
        %v1140 = vlaneseq
        %v1141 = vshrl.u32 %v1140, 7
        %v1142 = vsub.s32 0, %v1141
        %v1143 = vrot.slane %v1126, %v1142
        %v1144 = vlaneseq
        %v1145 = vshrl.u32 %v1144, 7
        %v1146 = vsub.s32 0, %v1145
        %v1147 = vrot.slane %v1127, %v1146
        %v1156 = vunpack.c.l.b16 %v1108
        %v1157 = vunpack.c.l.b16 %v1109
        %v1158 = vunpack.c.l.b16 %v1110
        %v1159 = vunpack.c.l.b16 %v1111
        %v1160 = vpack.c.b16 %v1157, %v1156
        %v1161 = vpack.c.b16 %v1159, %v1158
        %1164 = vmatprep.subr.bf16.mxu0 0
        %1165 = vmatpush1.bf16.msra.mxu0 %v1160
        %1166 = vmatprep.subr.bf16.mxu0 0
        %1167 = vmatpush1.bf16.msra.mxu0 %v1161
        %1168 = vmatprep.subr.bf16.mxu0 0
        %1169 = vmatpush1.bf16.msra.mxu0 0
        %1170 = vmatprep.subr.bf16.mxu0 0
        %1171 = vmatpush1.bf16.msra.mxu0 0
        %1172 = vmatprep.subr.bf16.mxu0 0
        %1173 = vmatpush1.bf16.msra.mxu0 0
        %1174 = vmatprep.subr.bf16.mxu0 0
        %1175 = vmatpush1.bf16.msra.mxu0 0
        %1176 = vmatprep.subr.bf16.mxu0 0
        %1177 = vmatpush1.bf16.msra.mxu0 0
        %1178 = vmatprep.subr.bf16.mxu0 0
        %1179 = vmatpush1.bf16.msra.mxu0 0
        %1180 = vmatprep.subr.bf16.mxu0 0
        %1181 = vmatpush1.bf16.msra.mxu0 0
        %1182 = vmatprep.subr.bf16.mxu0 0
        %1183 = vmatpush1.bf16.msra.mxu0 0
        %1184 = vmatprep.subr.bf16.mxu0 0
        %1185 = vmatpush1.bf16.msra.mxu0 0
        %1186 = vmatprep.subr.bf16.mxu0 0
        %1187 = vmatpush1.bf16.msra.mxu0 0
        %1188 = vmatprep.subr.bf16.mxu0 0
        %1189 = vmatpush1.bf16.msra.mxu0 0
        %1190 = vmatprep.subr.bf16.mxu0 0
        %1191 = vmatpush1.bf16.msra.mxu0 0
        %1192 = vmatprep.subr.bf16.mxu0 0
        %1193 = vmatpush1.bf16.msra.mxu0 0
        %1194 = vmatprep.subr.bf16.mxu0 0
        %1195 = vmatpush1.bf16.msra.mxu0 0
        %1196 = vmatprep.mubr.bf16.mxu0 0
        %1197 = vmatmul.mubr.bf16.gmra.mrb[0].mxu0 %v658
        %v1198 = vpop.f32.mrb[0].mxu0
        %v1199 = vadd.f32 %v1135, %v1198
        %v1200 = vpop.f32.mrb[0].mxu0
        %v1201 = vpop.f32.mrb[0].mxu0
        %v1202 = vpop.f32.mrb[0].mxu0
        %1203 = vdwg.mxu0
        %v1208 = vunpack.c.l.b16 %v1112
        %v1209 = vunpack.c.l.b16 %v1113
        %v1210 = vunpack.c.l.b16 %v1114
        %v1211 = vunpack.c.l.b16 %v1115
        %v1212 = vpack.c.b16 %v1209, %v1208
        %v1213 = vpack.c.b16 %v1211, %v1210
        %1216 = vmatprep.subr.bf16.mxu0 0
        %1217 = vmatpush1.bf16.msra.mxu0 %v1212
        %1218 = vmatprep.subr.bf16.mxu0 0
        %1219 = vmatpush1.bf16.msra.mxu0 %v1213
        %1220 = vmatprep.subr.bf16.mxu0 0
        %1221 = vmatpush1.bf16.msra.mxu0 0
        %1222 = vmatprep.subr.bf16.mxu0 0
        %1223 = vmatpush1.bf16.msra.mxu0 0
        %1224 = vmatprep.subr.bf16.mxu0 0
        %1225 = vmatpush1.bf16.msra.mxu0 0
        %1226 = vmatprep.subr.bf16.mxu0 0
        %1227 = vmatpush1.bf16.msra.mxu0 0
        %1228 = vmatprep.subr.bf16.mxu0 0
        %1229 = vmatpush1.bf16.msra.mxu0 0
        %1230 = vmatprep.subr.bf16.mxu0 0
        %1231 = vmatpush1.bf16.msra.mxu0 0
        %1232 = vmatprep.subr.bf16.mxu0 0
        %1233 = vmatpush1.bf16.msra.mxu0 0
        %1234 = vmatprep.subr.bf16.mxu0 0
        %1235 = vmatpush1.bf16.msra.mxu0 0
        %1236 = vmatprep.subr.bf16.mxu0 0
        %1237 = vmatpush1.bf16.msra.mxu0 0
        %1238 = vmatprep.subr.bf16.mxu0 0
        %1239 = vmatpush1.bf16.msra.mxu0 0
        %1240 = vmatprep.subr.bf16.mxu0 0
        %1241 = vmatpush1.bf16.msra.mxu0 0
        %1242 = vmatprep.subr.bf16.mxu0 0
        %1243 = vmatpush1.bf16.msra.mxu0 0
        %1244 = vmatprep.subr.bf16.mxu0 0
        %1245 = vmatpush1.bf16.msra.mxu0 0
        %1246 = vmatprep.subr.bf16.mxu0 0
        %1247 = vmatpush1.bf16.msra.mxu0 0
        %1248 = vmatprep.mubr.bf16.mxu0 0
        %1249 = vmatmul.mubr.bf16.gmra.mrb[0].mxu0 %v658
        %v1250 = vpop.f32.mrb[0].mxu0
        %v1251 = vadd.f32 %v1139, %v1250
        %v1252 = vpop.f32.mrb[0].mxu0
        %v1253 = vpop.f32.mrb[0].mxu0
        %v1254 = vpop.f32.mrb[0].mxu0
        %1255 = vdwg.mxu0
        %v1260 = vunpack.c.l.b16 %v1116
        %v1261 = vunpack.c.l.b16 %v1117
        %v1262 = vunpack.c.l.b16 %v1118
        %v1263 = vunpack.c.l.b16 %v1119
        %v1264 = vpack.c.b16 %v1261, %v1260
        %v1265 = vpack.c.b16 %v1263, %v1262
        %1268 = vmatprep.subr.bf16.mxu0 0
        %1269 = vmatpush1.bf16.msra.mxu0 %v1264
        %1270 = vmatprep.subr.bf16.mxu0 0
        %1271 = vmatpush1.bf16.msra.mxu0 %v1265
        %1272 = vmatprep.subr.bf16.mxu0 0
        %1273 = vmatpush1.bf16.msra.mxu0 0
        %1274 = vmatprep.subr.bf16.mxu0 0
        %1275 = vmatpush1.bf16.msra.mxu0 0
        %1276 = vmatprep.subr.bf16.mxu0 0
        %1277 = vmatpush1.bf16.msra.mxu0 0
        %1278 = vmatprep.subr.bf16.mxu0 0
        %1279 = vmatpush1.bf16.msra.mxu0 0
        %1280 = vmatprep.subr.bf16.mxu0 0
        %1281 = vmatpush1.bf16.msra.mxu0 0
        %1282 = vmatprep.subr.bf16.mxu0 0
        %1283 = vmatpush1.bf16.msra.mxu0 0
        %1284 = vmatprep.subr.bf16.mxu0 0
        %1285 = vmatpush1.bf16.msra.mxu0 0
        %1286 = vmatprep.subr.bf16.mxu0 0
        %1287 = vmatpush1.bf16.msra.mxu0 0
        %1288 = vmatprep.subr.bf16.mxu0 0
        %1289 = vmatpush1.bf16.msra.mxu0 0
        %1290 = vmatprep.subr.bf16.mxu0 0
        %1291 = vmatpush1.bf16.msra.mxu0 0
        %1292 = vmatprep.subr.bf16.mxu0 0
        %1293 = vmatpush1.bf16.msra.mxu0 0
        %1294 = vmatprep.subr.bf16.mxu0 0
        %1295 = vmatpush1.bf16.msra.mxu0 0
        %1296 = vmatprep.subr.bf16.mxu0 0
        %1297 = vmatpush1.bf16.msra.mxu0 0
        %1298 = vmatprep.subr.bf16.mxu0 0
        %1299 = vmatpush1.bf16.msra.mxu0 0
        %1300 = vmatprep.mubr.bf16.mxu0 0
        %1301 = vmatmul.mubr.bf16.gmra.mrb[0].mxu0 %v658
        %v1302 = vpop.f32.mrb[0].mxu0
        %v1303 = vadd.f32 %v1143, %v1302
        %v1304 = vpop.f32.mrb[0].mxu0
        %v1305 = vpop.f32.mrb[0].mxu0
        %v1306 = vpop.f32.mrb[0].mxu0
        %1307 = vdwg.mxu0
        %v1312 = vunpack.c.l.b16 %v1120
        %v1313 = vunpack.c.l.b16 %v1121
        %v1314 = vunpack.c.l.b16 %v1122
        %v1315 = vunpack.c.l.b16 %v1123
        %v1316 = vpack.c.b16 %v1313, %v1312
        %v1317 = vpack.c.b16 %v1315, %v1314
        %1320 = vmatprep.subr.bf16.mxu0 0
        %1321 = vmatpush1.bf16.msra.mxu0 %v1316
        %1322 = vmatprep.subr.bf16.mxu0 0
        %1323 = vmatpush1.bf16.msra.mxu0 %v1317
        %1324 = vmatprep.subr.bf16.mxu0 0
        %1325 = vmatpush1.bf16.msra.mxu0 0
        %1326 = vmatprep.subr.bf16.mxu0 0
        %1327 = vmatpush1.bf16.msra.mxu0 0
        %1328 = vmatprep.subr.bf16.mxu0 0
        %1329 = vmatpush1.bf16.msra.mxu0 0
        %1330 = vmatprep.subr.bf16.mxu0 0
        %1331 = vmatpush1.bf16.msra.mxu0 0
        %1332 = vmatprep.subr.bf16.mxu0 0
        %1333 = vmatpush1.bf16.msra.mxu0 0
        %1334 = vmatprep.subr.bf16.mxu0 0
        %1335 = vmatpush1.bf16.msra.mxu0 0
        %1336 = vmatprep.subr.bf16.mxu0 0
        %1337 = vmatpush1.bf16.msra.mxu0 0
        %1338 = vmatprep.subr.bf16.mxu0 0
        %1339 = vmatpush1.bf16.msra.mxu0 0
        %1340 = vmatprep.subr.bf16.mxu0 0
        %1341 = vmatpush1.bf16.msra.mxu0 0
        %1342 = vmatprep.subr.bf16.mxu0 0
        %1343 = vmatpush1.bf16.msra.mxu0 0
        %1344 = vmatprep.subr.bf16.mxu0 0
        %1345 = vmatpush1.bf16.msra.mxu0 0
        %1346 = vmatprep.subr.bf16.mxu0 0
        %1347 = vmatpush1.bf16.msra.mxu0 0
        %1348 = vmatprep.subr.bf16.mxu0 0
        %1349 = vmatpush1.bf16.msra.mxu0 0
        %1350 = vmatprep.subr.bf16.mxu0 0
        %1351 = vmatpush1.bf16.msra.mxu0 0
        %1352 = vmatprep.mubr.bf16.mxu0 0
        %1353 = vmatmul.mubr.bf16.gmra.mrb[0].mxu0 %v658
        %v1354 = vpop.f32.mrb[0].mxu0
        %v1355 = vadd.f32 %v1147, %v1354
        %v1356 = vpop.f32.mrb[0].mxu0
        %v1357 = vpop.f32.mrb[0].mxu0
        %v1358 = vpop.f32.mrb[0].mxu0
        %1359 = vdwg.mxu0
        %v1360 = vmul.f32 %v1199, 0.35355338
        %v1361 = vmul.f32 %v1251, 0.35355338
        %v1362 = vmul.f32 %v1303, 0.35355338
        %v1363 = vmul.f32 %v1355, 0.35355338
        %v1364 = vpack.c.bf16 %v1360, %v1360
        %v1365 = vpack.c.bf16 %v1361, %v1361
        %v1366 = vpack.c.bf16 %v1362, %v1362
        %v1367 = vpack.c.bf16 %v1363, %v1363
        %v1368 = vpack.c.bf16 %v695, %v695
        %v1369 = vpack.c.bf16 %v747, %v747
        %v1370 = vpack.c.bf16 %v799, %v799
        %v1371 = vpack.c.bf16 %v851, %v851
        %v1372 = vpack.c.bf16 %v947, %v947
        %v1373 = vpack.c.bf16 %v999, %v999
        %v1374 = vpack.c.bf16 %v1051, %v1051
        %v1375 = vpack.c.bf16 %v1103, %v1103
        %vm1376 = vcmask 64512
        %v1378 = vsel %vm1376, %v1364, 0
        %v1381 = vsel %vm1376, %v1368, 0
        %1383 = vmatprep.subr.bf16.mxu0 0
        %1384 = vmatpush1.bf16.xpose.msra.mxu0 %v1381
        %1385 = vmatprep.subr.bf16.mxu0 0
        %1386 = vmatpush1.bf16.xpose.msra.mxu0 0
        %1387 = vmatprep.subr.bf16.mxu0 0
        %1388 = vmatpush1.bf16.xpose.msra.mxu0 0
        %1389 = vmatprep.subr.bf16.mxu0 0
        %1390 = vmatpush1.bf16.xpose.msra.mxu0 0
        %1391 = vmatprep.subr.bf16.mxu0 0
        %1392 = vmatpush1.bf16.xpose.msra.mxu0 0
        %1393 = vmatprep.subr.bf16.mxu0 0
        %1394 = vmatpush1.bf16.xpose.msra.mxu0 0
        %1395 = vmatprep.subr.bf16.mxu0 0
        %1396 = vmatpush1.bf16.xpose.msra.mxu0 0
        %1397 = vmatprep.subr.bf16.mxu0 0
        %1398 = vmatpush1.bf16.xpose.msra.mxu0 0
        %1399 = vmatprep.subr.bf16.mxu0 0
        %1400 = vmatpush1.bf16.xpose.msra.mxu0 0
        %1401 = vmatprep.subr.bf16.mxu0 0
        %1402 = vmatpush1.bf16.xpose.msra.mxu0 0
        %1403 = vmatprep.subr.bf16.mxu0 0
        %1404 = vmatpush1.bf16.xpose.msra.mxu0 0
        %1405 = vmatprep.subr.bf16.mxu0 0
        %1406 = vmatpush1.bf16.xpose.msra.mxu0 0
        %1407 = vmatprep.subr.bf16.mxu0 0
        %1408 = vmatpush1.bf16.xpose.msra.mxu0 0
        %1409 = vmatprep.subr.bf16.mxu0 0
        %1410 = vmatpush1.bf16.xpose.msra.mxu0 0
        %1411 = vmatprep.subr.bf16.mxu0 0
        %1412 = vmatpush1.bf16.xpose.msra.mxu0 0
        %1413 = vmatprep.subr.bf16.mxu0 0
        %1414 = vmatpush1.bf16.xpose.msra.mxu0 0
        %1415 = vmatprep.mubr.bf16.mxu0 0
        %1416 = vmatmul.mubr.bf16.gmra.mrb[0].mxu0 %v1378
        %v1417 = vpop.f32.mrb[0].mxu0
        %v1418 = vadd.f32 0.0, %v1417
        %v1419 = vpop.f32.mrb[0].mxu0
        %v1420 = vpop.f32.mrb[0].mxu0
        %v1421 = vpop.f32.mrb[0].mxu0
        %1422 = vdwg.mxu0
        %v1424 = vsel %vm1376, %v1365, 0
        %v1427 = vsel %vm1376, %v1369, 0
        %1429 = vmatprep.subr.bf16.mxu0 0
        %1430 = vmatpush1.bf16.xpose.msra.mxu0 %v1427
        %1431 = vmatprep.subr.bf16.mxu0 0
        %1432 = vmatpush1.bf16.xpose.msra.mxu0 0
        %1433 = vmatprep.subr.bf16.mxu0 0
        %1434 = vmatpush1.bf16.xpose.msra.mxu0 0
        %1435 = vmatprep.subr.bf16.mxu0 0
        %1436 = vmatpush1.bf16.xpose.msra.mxu0 0
        %1437 = vmatprep.subr.bf16.mxu0 0
        %1438 = vmatpush1.bf16.xpose.msra.mxu0 0
        %1439 = vmatprep.subr.bf16.mxu0 0
        %1440 = vmatpush1.bf16.xpose.msra.mxu0 0
        %1441 = vmatprep.subr.bf16.mxu0 0
        %1442 = vmatpush1.bf16.xpose.msra.mxu0 0
        %1443 = vmatprep.subr.bf16.mxu0 0
        %1444 = vmatpush1.bf16.xpose.msra.mxu0 0
        %1445 = vmatprep.subr.bf16.mxu0 0
        %1446 = vmatpush1.bf16.xpose.msra.mxu0 0
        %1447 = vmatprep.subr.bf16.mxu0 0
        %1448 = vmatpush1.bf16.xpose.msra.mxu0 0
        %1449 = vmatprep.subr.bf16.mxu0 0
        %1450 = vmatpush1.bf16.xpose.msra.mxu0 0
        %1451 = vmatprep.subr.bf16.mxu0 0
        %1452 = vmatpush1.bf16.xpose.msra.mxu0 0
        %1453 = vmatprep.subr.bf16.mxu0 0
        %1454 = vmatpush1.bf16.xpose.msra.mxu0 0
        %1455 = vmatprep.subr.bf16.mxu0 0
        %1456 = vmatpush1.bf16.xpose.msra.mxu0 0
        %1457 = vmatprep.subr.bf16.mxu0 0
        %1458 = vmatpush1.bf16.xpose.msra.mxu0 0
        %1459 = vmatprep.subr.bf16.mxu0 0
        %1460 = vmatpush1.bf16.xpose.msra.mxu0 0
        %1461 = vmatprep.mubr.bf16.mxu0 0
        %1462 = vmatmul.mubr.bf16.gmra.mrb[0].mxu0 %v1424
        %v1463 = vpop.f32.mrb[0].mxu0
        %v1464 = vadd.f32 0.0, %v1463
        %v1465 = vpop.f32.mrb[0].mxu0
        %v1466 = vpop.f32.mrb[0].mxu0
        %v1467 = vpop.f32.mrb[0].mxu0
        %1468 = vdwg.mxu0
        %v1470 = vsel %vm1376, %v1366, 0
        %v1473 = vsel %vm1376, %v1370, 0
        %1475 = vmatprep.subr.bf16.mxu0 0
        %1476 = vmatpush1.bf16.xpose.msra.mxu0 %v1473
        %1477 = vmatprep.subr.bf16.mxu0 0
        %1478 = vmatpush1.bf16.xpose.msra.mxu0 0
        %1479 = vmatprep.subr.bf16.mxu0 0
        %1480 = vmatpush1.bf16.xpose.msra.mxu0 0
        %1481 = vmatprep.subr.bf16.mxu0 0
        %1482 = vmatpush1.bf16.xpose.msra.mxu0 0
        %1483 = vmatprep.subr.bf16.mxu0 0
        %1484 = vmatpush1.bf16.xpose.msra.mxu0 0
        %1485 = vmatprep.subr.bf16.mxu0 0
        %1486 = vmatpush1.bf16.xpose.msra.mxu0 0
        %1487 = vmatprep.subr.bf16.mxu0 0
        %1488 = vmatpush1.bf16.xpose.msra.mxu0 0
        %1489 = vmatprep.subr.bf16.mxu0 0
        %1490 = vmatpush1.bf16.xpose.msra.mxu0 0
        %1491 = vmatprep.subr.bf16.mxu0 0
        %1492 = vmatpush1.bf16.xpose.msra.mxu0 0
        %1493 = vmatprep.subr.bf16.mxu0 0
        %1494 = vmatpush1.bf16.xpose.msra.mxu0 0
        %1495 = vmatprep.subr.bf16.mxu0 0
        %1496 = vmatpush1.bf16.xpose.msra.mxu0 0
        %1497 = vmatprep.subr.bf16.mxu0 0
        %1498 = vmatpush1.bf16.xpose.msra.mxu0 0
        %1499 = vmatprep.subr.bf16.mxu0 0
        %1500 = vmatpush1.bf16.xpose.msra.mxu0 0
        %1501 = vmatprep.subr.bf16.mxu0 0
        %1502 = vmatpush1.bf16.xpose.msra.mxu0 0
        %1503 = vmatprep.subr.bf16.mxu0 0
        %1504 = vmatpush1.bf16.xpose.msra.mxu0 0
        %1505 = vmatprep.subr.bf16.mxu0 0
        %1506 = vmatpush1.bf16.xpose.msra.mxu0 0
        %1507 = vmatprep.mubr.bf16.mxu0 0
        %1508 = vmatmul.mubr.bf16.gmra.mrb[0].mxu0 %v1470
        %v1509 = vpop.f32.mrb[0].mxu0
        %v1510 = vadd.f32 0.0, %v1509
        %v1511 = vpop.f32.mrb[0].mxu0
        %v1512 = vpop.f32.mrb[0].mxu0
        %v1513 = vpop.f32.mrb[0].mxu0
        %1514 = vdwg.mxu0
        %v1516 = vsel %vm1376, %v1367, 0
        %v1519 = vsel %vm1376, %v1371, 0
        %1521 = vmatprep.subr.bf16.mxu0 0
        %1522 = vmatpush1.bf16.xpose.msra.mxu0 %v1519
        %1523 = vmatprep.subr.bf16.mxu0 0
        %1524 = vmatpush1.bf16.xpose.msra.mxu0 0
        %1525 = vmatprep.subr.bf16.mxu0 0
        %1526 = vmatpush1.bf16.xpose.msra.mxu0 0
        %1527 = vmatprep.subr.bf16.mxu0 0
        %1528 = vmatpush1.bf16.xpose.msra.mxu0 0
        %1529 = vmatprep.subr.bf16.mxu0 0
        %1530 = vmatpush1.bf16.xpose.msra.mxu0 0
        %1531 = vmatprep.subr.bf16.mxu0 0
        %1532 = vmatpush1.bf16.xpose.msra.mxu0 0
        %1533 = vmatprep.subr.bf16.mxu0 0
        %1534 = vmatpush1.bf16.xpose.msra.mxu0 0
        %1535 = vmatprep.subr.bf16.mxu0 0
        %1536 = vmatpush1.bf16.xpose.msra.mxu0 0
        %1537 = vmatprep.subr.bf16.mxu0 0
        %1538 = vmatpush1.bf16.xpose.msra.mxu0 0
        %1539 = vmatprep.subr.bf16.mxu0 0
        %1540 = vmatpush1.bf16.xpose.msra.mxu0 0
        %1541 = vmatprep.subr.bf16.mxu0 0
        %1542 = vmatpush1.bf16.xpose.msra.mxu0 0
        %1543 = vmatprep.subr.bf16.mxu0 0
        %1544 = vmatpush1.bf16.xpose.msra.mxu0 0
        %1545 = vmatprep.subr.bf16.mxu0 0
        %1546 = vmatpush1.bf16.xpose.msra.mxu0 0
        %1547 = vmatprep.subr.bf16.mxu0 0
        %1548 = vmatpush1.bf16.xpose.msra.mxu0 0
        %1549 = vmatprep.subr.bf16.mxu0 0
        %1550 = vmatpush1.bf16.xpose.msra.mxu0 0
        %1551 = vmatprep.subr.bf16.mxu0 0
        %1552 = vmatpush1.bf16.xpose.msra.mxu0 0
        %1553 = vmatprep.mubr.bf16.mxu0 0
        %1554 = vmatmul.mubr.bf16.gmra.mrb[0].mxu0 %v1516
        %v1555 = vpop.f32.mrb[0].mxu0
        %v1556 = vadd.f32 0.0, %v1555
        %v1557 = vpop.f32.mrb[0].mxu0
        %v1558 = vpop.f32.mrb[0].mxu0
        %v1559 = vpop.f32.mrb[0].mxu0
        %1560 = vdwg.mxu0
        %v1561 = vsel %vm1376, %v1418, -inf
        %1562 = vmax.xlane.f32.xlu0 %v1561
        %v1563 = vpop.xlane.xlu0 %1562
        %v1564 = vsel %vm1376, %v1464, -inf
        %1565 = vmax.xlane.f32.xlu0 %v1564
        %v1566 = vpop.xlane.xlu0 %1565
        %v1567 = vsel %vm1376, %v1510, -inf
        %1568 = vmax.xlane.f32.xlu0 %v1567
        %v1569 = vpop.xlane.xlu0 %1568
        %v1570 = vsel %vm1376, %v1556, -inf
        %1571 = vmax.xlane.f32.xlu0 %v1570
        %v1572 = vpop.xlane.xlu0 %1571
        %v1573 = vsub.f32 %v1418, %v1563
        %v1574 = vsub.f32 %v1464, %v1566
        %v1575 = vsub.f32 %v1510, %v1569
        %v1576 = vsub.f32 %v1556, %v1572
        %v1577 = vmul.f32 %v1573, 1.442695
        %v1578 = vpow.pop %v1577
        %v1579 = vmul.f32 %v1574, 1.442695
        %v1580 = vpow.pop %v1579
        %v1581 = vmul.f32 %v1575, 1.442695
        %v1582 = vpow.pop %v1581
        %v1583 = vmul.f32 %v1576, 1.442695
        %v1584 = vpow.pop %v1583
        %v1585 = vsel %vm1376, %v1578, 0.0
        %1586 = vadd.xlane.f32.xlu0 %v1585
        %v1587 = vpop.xlane.xlu0 %1586
        %v1588 = vsel %vm1376, %v1580, 0.0
        %1589 = vadd.xlane.f32.xlu0 %v1588
        %v1590 = vpop.xlane.xlu0 %1589
        %v1591 = vsel %vm1376, %v1582, 0.0
        %1592 = vadd.xlane.f32.xlu0 %v1591
        %v1593 = vpop.xlane.xlu0 %1592
        %v1594 = vsel %vm1376, %v1584, 0.0
        %1595 = vadd.xlane.f32.xlu0 %v1594
        %v1596 = vpop.xlane.xlu0 %1595
        %v1597 = vrcp.pop %v1587
        %v1598 = vrcp.pop %v1590
        %v1599 = vrcp.pop %v1593
        %v1600 = vrcp.pop %v1596
        %v1601 = vmul.f32 %v1578, %v1597
        %v1602 = vmul.f32 %v1580, %v1598
        %v1603 = vmul.f32 %v1582, %v1599
        %v1604 = vmul.f32 %v1584, %v1600
        %1605 = vst.msk [vmem:[%s593] sm:$0xff] %vm1376, %v1601
        %1606 = vst.msk [vmem:[%s593 + $0x8] sm:$0xff] %vm1376, %v1602
        %1607 = vst.msk [vmem:[%s593 + $0x10] sm:$0xff] %vm1376, %v1603
        %1608 = vst.msk [vmem:[%s593 + $0x18] sm:$0xff] %vm1376, %v1604
        %v1609 = vpack.c.bf16 %v1601, %v1601
        %v1610 = vpack.c.bf16 %v1602, %v1602
        %v1611 = vpack.c.bf16 %v1603, %v1603
        %v1612 = vpack.c.bf16 %v1604, %v1604
        %v1614 = vsel %vm1376, %v1609, 0
        %vm1616 = vcmask 1043456
        %v1618 = vsel %vm1616, %v1372, 0
        %1620 = vmatprep.subr.bf16.mxu0 0
        %1621 = vmatpush1.bf16.msra.mxu0 %v1618
        %1622 = vmatprep.subr.bf16.mxu0 0
        %1623 = vmatpush1.bf16.msra.mxu0 0
        %1624 = vmatprep.subr.bf16.mxu0 0
        %1625 = vmatpush1.bf16.msra.mxu0 0
        %1626 = vmatprep.subr.bf16.mxu0 0
        %1627 = vmatpush1.bf16.msra.mxu0 0
        %1628 = vmatprep.subr.bf16.mxu0 0
        %1629 = vmatpush1.bf16.msra.mxu0 0
        %1630 = vmatprep.subr.bf16.mxu0 0
        %1631 = vmatpush1.bf16.msra.mxu0 0
        %1632 = vmatprep.subr.bf16.mxu0 0
        %1633 = vmatpush1.bf16.msra.mxu0 0
        %1634 = vmatprep.subr.bf16.mxu0 0
        %1635 = vmatpush1.bf16.msra.mxu0 0
        %1636 = vmatprep.subr.bf16.mxu0 0
        %1637 = vmatpush1.bf16.msra.mxu0 0
        %1638 = vmatprep.subr.bf16.mxu0 0
        %1639 = vmatpush1.bf16.msra.mxu0 0
        %1640 = vmatprep.subr.bf16.mxu0 0
        %1641 = vmatpush1.bf16.msra.mxu0 0
        %1642 = vmatprep.subr.bf16.mxu0 0
        %1643 = vmatpush1.bf16.msra.mxu0 0
        %1644 = vmatprep.subr.bf16.mxu0 0
        %1645 = vmatpush1.bf16.msra.mxu0 0
        %1646 = vmatprep.subr.bf16.mxu0 0
        %1647 = vmatpush1.bf16.msra.mxu0 0
        %1648 = vmatprep.subr.bf16.mxu0 0
        %1649 = vmatpush1.bf16.msra.mxu0 0
        %1650 = vmatprep.subr.bf16.mxu0 0
        %1651 = vmatpush1.bf16.msra.mxu0 0
        %1652 = vmatprep.mubr.bf16.mxu0 0
        %1653 = vmatmul.mubr.bf16.gmra.mrb[0].mxu0 %v1614
        %v1654 = vpop.f32.mrb[0].mxu0
        %v1655 = vadd.f32 0.0, %v1654
        %v1656 = vpop.f32.mrb[0].mxu0
        %v1657 = vpop.f32.mrb[0].mxu0
        %v1658 = vpop.f32.mrb[0].mxu0
        %1659 = vdwg.mxu0
        %v1661 = vsel %vm1376, %v1610, 0
        %v1664 = vsel %vm1616, %v1373, 0
        %1666 = vmatprep.subr.bf16.mxu0 0
        %1667 = vmatpush1.bf16.msra.mxu0 %v1664
        %1668 = vmatprep.subr.bf16.mxu0 0
        %1669 = vmatpush1.bf16.msra.mxu0 0
        %1670 = vmatprep.subr.bf16.mxu0 0
        %1671 = vmatpush1.bf16.msra.mxu0 0
        %1672 = vmatprep.subr.bf16.mxu0 0
        %1673 = vmatpush1.bf16.msra.mxu0 0
        %1674 = vmatprep.subr.bf16.mxu0 0
        %1675 = vmatpush1.bf16.msra.mxu0 0
        %1676 = vmatprep.subr.bf16.mxu0 0
        %1677 = vmatpush1.bf16.msra.mxu0 0
        %1678 = vmatprep.subr.bf16.mxu0 0
        %1679 = vmatpush1.bf16.msra.mxu0 0
        %1680 = vmatprep.subr.bf16.mxu0 0
        %1681 = vmatpush1.bf16.msra.mxu0 0
        %1682 = vmatprep.subr.bf16.mxu0 0
        %1683 = vmatpush1.bf16.msra.mxu0 0
        %1684 = vmatprep.subr.bf16.mxu0 0
        %1685 = vmatpush1.bf16.msra.mxu0 0
        %1686 = vmatprep.subr.bf16.mxu0 0
        %1687 = vmatpush1.bf16.msra.mxu0 0
        %1688 = vmatprep.subr.bf16.mxu0 0
        %1689 = vmatpush1.bf16.msra.mxu0 0
        %1690 = vmatprep.subr.bf16.mxu0 0
        %1691 = vmatpush1.bf16.msra.mxu0 0
        %1692 = vmatprep.subr.bf16.mxu0 0
        %1693 = vmatpush1.bf16.msra.mxu0 0
        %1694 = vmatprep.subr.bf16.mxu0 0
        %1695 = vmatpush1.bf16.msra.mxu0 0
        %1696 = vmatprep.subr.bf16.mxu0 0
        %1697 = vmatpush1.bf16.msra.mxu0 0
        %1698 = vmatprep.mubr.bf16.mxu0 0
        %1699 = vmatmul.mubr.bf16.gmra.mrb[0].mxu0 %v1661
        %v1700 = vpop.f32.mrb[0].mxu0
        %v1701 = vadd.f32 0.0, %v1700
        %v1702 = vpop.f32.mrb[0].mxu0
        %v1703 = vpop.f32.mrb[0].mxu0
        %v1704 = vpop.f32.mrb[0].mxu0
        %1705 = vdwg.mxu0
        %v1707 = vsel %vm1376, %v1611, 0
        %v1710 = vsel %vm1616, %v1374, 0
        %1712 = vmatprep.subr.bf16.mxu0 0
        %1713 = vmatpush1.bf16.msra.mxu0 %v1710
        %1714 = vmatprep.subr.bf16.mxu0 0
        %1715 = vmatpush1.bf16.msra.mxu0 0
        %1716 = vmatprep.subr.bf16.mxu0 0
        %1717 = vmatpush1.bf16.msra.mxu0 0
        %1718 = vmatprep.subr.bf16.mxu0 0
        %1719 = vmatpush1.bf16.msra.mxu0 0
        %1720 = vmatprep.subr.bf16.mxu0 0
        %1721 = vmatpush1.bf16.msra.mxu0 0
        %1722 = vmatprep.subr.bf16.mxu0 0
        %1723 = vmatpush1.bf16.msra.mxu0 0
        %1724 = vmatprep.subr.bf16.mxu0 0
        %1725 = vmatpush1.bf16.msra.mxu0 0
        %1726 = vmatprep.subr.bf16.mxu0 0
        %1727 = vmatpush1.bf16.msra.mxu0 0
        %1728 = vmatprep.subr.bf16.mxu0 0
        %1729 = vmatpush1.bf16.msra.mxu0 0
        %1730 = vmatprep.subr.bf16.mxu0 0
        %1731 = vmatpush1.bf16.msra.mxu0 0
        %1732 = vmatprep.subr.bf16.mxu0 0
        %1733 = vmatpush1.bf16.msra.mxu0 0
        %1734 = vmatprep.subr.bf16.mxu0 0
        %1735 = vmatpush1.bf16.msra.mxu0 0
        %1736 = vmatprep.subr.bf16.mxu0 0
        %1737 = vmatpush1.bf16.msra.mxu0 0
        %1738 = vmatprep.subr.bf16.mxu0 0
        %1739 = vmatpush1.bf16.msra.mxu0 0
        %1740 = vmatprep.subr.bf16.mxu0 0
        %1741 = vmatpush1.bf16.msra.mxu0 0
        %1742 = vmatprep.subr.bf16.mxu0 0
        %1743 = vmatpush1.bf16.msra.mxu0 0
        %1744 = vmatprep.mubr.bf16.mxu0 0
        %1745 = vmatmul.mubr.bf16.gmra.mrb[0].mxu0 %v1707
        %v1746 = vpop.f32.mrb[0].mxu0
        %v1747 = vadd.f32 0.0, %v1746
        %v1748 = vpop.f32.mrb[0].mxu0
        %v1749 = vpop.f32.mrb[0].mxu0
        %v1750 = vpop.f32.mrb[0].mxu0
        %1751 = vdwg.mxu0
        %v1753 = vsel %vm1376, %v1612, 0
        %v1756 = vsel %vm1616, %v1375, 0
        %1758 = vmatprep.subr.bf16.mxu0 0
        %1759 = vmatpush1.bf16.msra.mxu0 %v1756
        %1760 = vmatprep.subr.bf16.mxu0 0
        %1761 = vmatpush1.bf16.msra.mxu0 0
        %1762 = vmatprep.subr.bf16.mxu0 0
        %1763 = vmatpush1.bf16.msra.mxu0 0
        %1764 = vmatprep.subr.bf16.mxu0 0
        %1765 = vmatpush1.bf16.msra.mxu0 0
        %1766 = vmatprep.subr.bf16.mxu0 0
        %1767 = vmatpush1.bf16.msra.mxu0 0
        %1768 = vmatprep.subr.bf16.mxu0 0
        %1769 = vmatpush1.bf16.msra.mxu0 0
        %1770 = vmatprep.subr.bf16.mxu0 0
        %1771 = vmatpush1.bf16.msra.mxu0 0
        %1772 = vmatprep.subr.bf16.mxu0 0
        %1773 = vmatpush1.bf16.msra.mxu0 0
        %1774 = vmatprep.subr.bf16.mxu0 0
        %1775 = vmatpush1.bf16.msra.mxu0 0
        %1776 = vmatprep.subr.bf16.mxu0 0
        %1777 = vmatpush1.bf16.msra.mxu0 0
        %1778 = vmatprep.subr.bf16.mxu0 0
        %1779 = vmatpush1.bf16.msra.mxu0 0
        %1780 = vmatprep.subr.bf16.mxu0 0
        %1781 = vmatpush1.bf16.msra.mxu0 0
        %1782 = vmatprep.subr.bf16.mxu0 0
        %1783 = vmatpush1.bf16.msra.mxu0 0
        %1784 = vmatprep.subr.bf16.mxu0 0
        %1785 = vmatpush1.bf16.msra.mxu0 0
        %1786 = vmatprep.subr.bf16.mxu0 0
        %1787 = vmatpush1.bf16.msra.mxu0 0
        %1788 = vmatprep.subr.bf16.mxu0 0
        %1789 = vmatpush1.bf16.msra.mxu0 0
        %1790 = vmatprep.mubr.bf16.mxu0 0
        %1791 = vmatmul.mubr.bf16.gmra.mrb[0].mxu0 %v1753
        %v1792 = vpop.f32.mrb[0].mxu0
        %v1793 = vadd.f32 0.0, %v1792
        %v1794 = vpop.f32.mrb[0].mxu0
        %v1795 = vpop.f32.mrb[0].mxu0
        %v1796 = vpop.f32.mrb[0].mxu0
        %1797 = vdwg.mxu0
        %v1798 = vpack.c.bf16 %v1655, %v1655
        %v1799 = vpack.c.bf16 %v1701, %v1701
        %v1800 = vpack.c.bf16 %v1747, %v1747
        %v1801 = vpack.c.bf16 %v1793, %v1793
        %v1802 = vld [vmem:[%s7] sm:$0xf]
        %v1803 = vld [vmem:[%s7 + $0x4] sm:$0xf]
        %v1804 = vld [vmem:[%s7 + $0x8] sm:$0xf]
        %v1805 = vld [vmem:[%s7 + $0xc] sm:$0xf]
        %v1807 = vsel %vm1376, %v1798, 0
        %v1810 = vsel %vm1616, %v1802, 0
        %1812 = vmatprep.subr.bf16.mxu0 0
        %1813 = vmatpush1.bf16.msra.mxu0 %v1810
        %1814 = vmatprep.subr.bf16.mxu0 0
        %1815 = vmatpush1.bf16.msra.mxu0 0
        %1816 = vmatprep.subr.bf16.mxu0 0
        %1817 = vmatpush1.bf16.msra.mxu0 0
        %1818 = vmatprep.subr.bf16.mxu0 0
        %1819 = vmatpush1.bf16.msra.mxu0 0
        %1820 = vmatprep.subr.bf16.mxu0 0
        %1821 = vmatpush1.bf16.msra.mxu0 0
        %1822 = vmatprep.subr.bf16.mxu0 0
        %1823 = vmatpush1.bf16.msra.mxu0 0
        %1824 = vmatprep.subr.bf16.mxu0 0
        %1825 = vmatpush1.bf16.msra.mxu0 0
        %1826 = vmatprep.subr.bf16.mxu0 0
        %1827 = vmatpush1.bf16.msra.mxu0 0
        %1828 = vmatprep.subr.bf16.mxu0 0
        %1829 = vmatpush1.bf16.msra.mxu0 0
        %1830 = vmatprep.subr.bf16.mxu0 0
        %1831 = vmatpush1.bf16.msra.mxu0 0
        %1832 = vmatprep.subr.bf16.mxu0 0
        %1833 = vmatpush1.bf16.msra.mxu0 0
        %1834 = vmatprep.subr.bf16.mxu0 0
        %1835 = vmatpush1.bf16.msra.mxu0 0
        %1836 = vmatprep.subr.bf16.mxu0 0
        %1837 = vmatpush1.bf16.msra.mxu0 0
        %1838 = vmatprep.subr.bf16.mxu0 0
        %1839 = vmatpush1.bf16.msra.mxu0 0
        %1840 = vmatprep.subr.bf16.mxu0 0
        %1841 = vmatpush1.bf16.msra.mxu0 0
        %1842 = vmatprep.subr.bf16.mxu0 0
        %1843 = vmatpush1.bf16.msra.mxu0 0
        %1844 = vmatprep.mubr.bf16.mxu0 0
        %1845 = vmatmul.mubr.bf16.gmra.mrb[0].mxu0 %v1807
        %v1846 = vpop.f32.mrb[0].mxu0
        %v1847 = vadd.f32 0.0, %v1846
        %v1848 = vpop.f32.mrb[0].mxu0
        %v1849 = vpop.f32.mrb[0].mxu0
        %v1850 = vpop.f32.mrb[0].mxu0
        %1851 = vdwg.mxu0
        %v1853 = vsel %vm1376, %v1799, 0
        %v1856 = vsel %vm1616, %v1803, 0
        %1858 = vmatprep.subr.bf16.mxu0 0
        %1859 = vmatpush1.bf16.msra.mxu0 %v1856
        %1860 = vmatprep.subr.bf16.mxu0 0
        %1861 = vmatpush1.bf16.msra.mxu0 0
        %1862 = vmatprep.subr.bf16.mxu0 0
        %1863 = vmatpush1.bf16.msra.mxu0 0
        %1864 = vmatprep.subr.bf16.mxu0 0
        %1865 = vmatpush1.bf16.msra.mxu0 0
        %1866 = vmatprep.subr.bf16.mxu0 0
        %1867 = vmatpush1.bf16.msra.mxu0 0
        %1868 = vmatprep.subr.bf16.mxu0 0
        %1869 = vmatpush1.bf16.msra.mxu0 0
        %1870 = vmatprep.subr.bf16.mxu0 0
        %1871 = vmatpush1.bf16.msra.mxu0 0
        %1872 = vmatprep.subr.bf16.mxu0 0
        %1873 = vmatpush1.bf16.msra.mxu0 0
        %1874 = vmatprep.subr.bf16.mxu0 0
        %1875 = vmatpush1.bf16.msra.mxu0 0
        %1876 = vmatprep.subr.bf16.mxu0 0
        %1877 = vmatpush1.bf16.msra.mxu0 0
        %1878 = vmatprep.subr.bf16.mxu0 0
        %1879 = vmatpush1.bf16.msra.mxu0 0
        %1880 = vmatprep.subr.bf16.mxu0 0
        %1881 = vmatpush1.bf16.msra.mxu0 0
        %1882 = vmatprep.subr.bf16.mxu0 0
        %1883 = vmatpush1.bf16.msra.mxu0 0
        %1884 = vmatprep.subr.bf16.mxu0 0
        %1885 = vmatpush1.bf16.msra.mxu0 0
        %1886 = vmatprep.subr.bf16.mxu0 0
        %1887 = vmatpush1.bf16.msra.mxu0 0
        %1888 = vmatprep.subr.bf16.mxu0 0
        %1889 = vmatpush1.bf16.msra.mxu0 0
        %1890 = vmatprep.mubr.bf16.mxu0 0
        %1891 = vmatmul.mubr.bf16.gmra.mrb[0].mxu0 %v1853
        %v1892 = vpop.f32.mrb[0].mxu0
        %v1893 = vadd.f32 0.0, %v1892
        %v1894 = vpop.f32.mrb[0].mxu0
        %v1895 = vpop.f32.mrb[0].mxu0
        %v1896 = vpop.f32.mrb[0].mxu0
        %1897 = vdwg.mxu0
        %v1899 = vsel %vm1376, %v1800, 0
        %v1902 = vsel %vm1616, %v1804, 0
        %1904 = vmatprep.subr.bf16.mxu0 0
        %1905 = vmatpush1.bf16.msra.mxu0 %v1902
        %1906 = vmatprep.subr.bf16.mxu0 0
        %1907 = vmatpush1.bf16.msra.mxu0 0
        %1908 = vmatprep.subr.bf16.mxu0 0
        %1909 = vmatpush1.bf16.msra.mxu0 0
        %1910 = vmatprep.subr.bf16.mxu0 0
        %1911 = vmatpush1.bf16.msra.mxu0 0
        %1912 = vmatprep.subr.bf16.mxu0 0
        %1913 = vmatpush1.bf16.msra.mxu0 0
        %1914 = vmatprep.subr.bf16.mxu0 0
        %1915 = vmatpush1.bf16.msra.mxu0 0
        %1916 = vmatprep.subr.bf16.mxu0 0
        %1917 = vmatpush1.bf16.msra.mxu0 0
        %1918 = vmatprep.subr.bf16.mxu0 0
        %1919 = vmatpush1.bf16.msra.mxu0 0
        %1920 = vmatprep.subr.bf16.mxu0 0
        %1921 = vmatpush1.bf16.msra.mxu0 0
        %1922 = vmatprep.subr.bf16.mxu0 0
        %1923 = vmatpush1.bf16.msra.mxu0 0
        %1924 = vmatprep.subr.bf16.mxu0 0
        %1925 = vmatpush1.bf16.msra.mxu0 0
        %1926 = vmatprep.subr.bf16.mxu0 0
        %1927 = vmatpush1.bf16.msra.mxu0 0
        %1928 = vmatprep.subr.bf16.mxu0 0
        %1929 = vmatpush1.bf16.msra.mxu0 0
        %1930 = vmatprep.subr.bf16.mxu0 0
        %1931 = vmatpush1.bf16.msra.mxu0 0
        %1932 = vmatprep.subr.bf16.mxu0 0
        %1933 = vmatpush1.bf16.msra.mxu0 0
        %1934 = vmatprep.subr.bf16.mxu0 0
        %1935 = vmatpush1.bf16.msra.mxu0 0
        %1936 = vmatprep.mubr.bf16.mxu0 0
        %1937 = vmatmul.mubr.bf16.gmra.mrb[0].mxu0 %v1899
        %v1938 = vpop.f32.mrb[0].mxu0
        %v1939 = vadd.f32 0.0, %v1938
        %v1940 = vpop.f32.mrb[0].mxu0
        %v1941 = vpop.f32.mrb[0].mxu0
        %v1942 = vpop.f32.mrb[0].mxu0
        %1943 = vdwg.mxu0
        %v1945 = vsel %vm1376, %v1801, 0
        %v1948 = vsel %vm1616, %v1805, 0
        %1950 = vmatprep.subr.bf16.mxu0 0
        %1951 = vmatpush1.bf16.msra.mxu0 %v1948
        %1952 = vmatprep.subr.bf16.mxu0 0
        %1953 = vmatpush1.bf16.msra.mxu0 0
        %1954 = vmatprep.subr.bf16.mxu0 0
        %1955 = vmatpush1.bf16.msra.mxu0 0
        %1956 = vmatprep.subr.bf16.mxu0 0
        %1957 = vmatpush1.bf16.msra.mxu0 0
        %1958 = vmatprep.subr.bf16.mxu0 0
        %1959 = vmatpush1.bf16.msra.mxu0 0
        %1960 = vmatprep.subr.bf16.mxu0 0
        %1961 = vmatpush1.bf16.msra.mxu0 0
        %1962 = vmatprep.subr.bf16.mxu0 0
        %1963 = vmatpush1.bf16.msra.mxu0 0
        %1964 = vmatprep.subr.bf16.mxu0 0
        %1965 = vmatpush1.bf16.msra.mxu0 0
        %1966 = vmatprep.subr.bf16.mxu0 0
        %1967 = vmatpush1.bf16.msra.mxu0 0
        %1968 = vmatprep.subr.bf16.mxu0 0
        %1969 = vmatpush1.bf16.msra.mxu0 0
        %1970 = vmatprep.subr.bf16.mxu0 0
        %1971 = vmatpush1.bf16.msra.mxu0 0
        %1972 = vmatprep.subr.bf16.mxu0 0
        %1973 = vmatpush1.bf16.msra.mxu0 0
        %1974 = vmatprep.subr.bf16.mxu0 0
        %1975 = vmatpush1.bf16.msra.mxu0 0
        %1976 = vmatprep.subr.bf16.mxu0 0
        %1977 = vmatpush1.bf16.msra.mxu0 0
        %1978 = vmatprep.subr.bf16.mxu0 0
        %1979 = vmatpush1.bf16.msra.mxu0 0
        %1980 = vmatprep.subr.bf16.mxu0 0
        %1981 = vmatpush1.bf16.msra.mxu0 0
        %1982 = vmatprep.mubr.bf16.mxu0 0
        %1983 = vmatmul.mubr.bf16.gmra.mrb[0].mxu0 %v1945
        %v1984 = vpop.f32.mrb[0].mxu0
        %v1985 = vadd.f32 0.0, %v1984
        %v1986 = vpop.f32.mrb[0].mxu0
        %v1987 = vpop.f32.mrb[0].mxu0
        %v1988 = vpop.f32.mrb[0].mxu0
        %1989 = vdwg.mxu0
        %v1990 = vsel %vm656, %v1847, 0.0
        %v1991 = vsel %vm656, %v1893, 0.0
        %v1992 = vadd.f32 %v1990, %v1991
        %v1993 = vsel %vm656, %v1939, 0.0
        %v1994 = vadd.f32 %v1992, %v1993
        %v1995 = vsel %vm656, %v1985, 0.0
        %v1996 = vadd.f32 %v1994, %v1995
        %v1997 = vld [vmem:[%s8] sm:$0x1]
        %v1999 = vlaneseq
        %v2000 = vshrl.u32 %v1999, 7
        %v2001 = vsub.s32 0, %v2000
        %v2002 = vrot.slane %v1997, %v2001
        %v2004 = vadd.f32 %v1996, %v2002
        %v2005 = vunpack.c.l.bf16 %v599
        %v2006 = vadd.f32 %v2004, %v2005
        %v2007 = vld [vmem:[%s9] sm:$0x1]
        %v2008 = vld [vmem:[%s10] sm:$0x1]
        %v2009 = vsel %vm656, %v2006, 0.0
        %2010 = vadd.xlane.f32.xlu0 %v2009
        %v2011 = vpop.xlane.xlu0 %2010
        %v2012 = vrcp.pop 32.0
        %v2013 = vmul.f32 %v2011, %v2012
        %v2014 = vsub.f32 %v2006, %v2013
        %v2015 = vmul.f32 %v2014, %v2014
        %v2016 = vsel %vm656, %v2015, 0.0
        %2017 = vadd.xlane.f32.xlu0 %v2016
        %v2018 = vpop.xlane.xlu0 %2017
        %v2019 = vmul.f32 %v2018, %v2012
        %v2020 = vadd.f32 %v2019, 1e-06
        %v2021 = vrsqrt.pop %v2020
        %v2022 = vmul.f32 %v2014, %v2021
        %v2024 = vlaneseq
        %v2025 = vshrl.u32 %v2024, 7
        %v2026 = vsub.s32 0, %v2025
        %v2027 = vrot.slane %v2007, %v2026
        %v2029 = vmul.f32 %v2022, %v2027
        %v2031 = vlaneseq
        %v2032 = vshrl.u32 %v2031, 7
        %v2033 = vsub.s32 0, %v2032
        %v2034 = vrot.slane %v2008, %v2033
        %v2036 = vadd.f32 %v2029, %v2034
        %v2037 = vpack.c.bf16 %v2036, %v2036
        %v2038 = vld [vmem:[%s11] sm:$0xf]
        %v2039 = vld [vmem:[%s11 + $0x4] sm:$0xf]
        %v2040 = vld [vmem:[%s11 + $0x8] sm:$0xf]
        %v2041 = vld [vmem:[%s11 + $0xc] sm:$0xf]
        %v2042 = vld [vmem:[%s12] sm:$0x1]
        %v2044 = vlaneseq
        %v2045 = vshrl.u32 %v2044, 7
        %v2046 = vsub.s32 0, %v2045
        %v2047 = vrot.slane %v2042, %v2046
        %v2053 = vunpack.c.l.b16 %v2038
        %v2054 = vunpack.c.l.b16 %v2039
        %v2055 = vunpack.c.l.b16 %v2040
        %v2056 = vunpack.c.l.b16 %v2041
        %v2057 = vpack.c.b16 %v2054, %v2053
        %v2058 = vpack.c.b16 %v2056, %v2055
        %v2062 = vsel %vm656, %v2037, 0
        %2064 = vmatprep.subr.bf16.mxu0 0
        %2065 = vmatpush1.bf16.msra.mxu0 %v2057
        %2066 = vmatprep.subr.bf16.mxu0 0
        %2067 = vmatpush1.bf16.msra.mxu0 %v2058
        %2068 = vmatprep.subr.bf16.mxu0 0
        %2069 = vmatpush1.bf16.msra.mxu0 0
        %2070 = vmatprep.subr.bf16.mxu0 0
        %2071 = vmatpush1.bf16.msra.mxu0 0
        %2072 = vmatprep.subr.bf16.mxu0 0
        %2073 = vmatpush1.bf16.msra.mxu0 0
        %2074 = vmatprep.subr.bf16.mxu0 0
        %2075 = vmatpush1.bf16.msra.mxu0 0
        %2076 = vmatprep.subr.bf16.mxu0 0
        %2077 = vmatpush1.bf16.msra.mxu0 0
        %2078 = vmatprep.subr.bf16.mxu0 0
        %2079 = vmatpush1.bf16.msra.mxu0 0
        %2080 = vmatprep.subr.bf16.mxu0 0
        %2081 = vmatpush1.bf16.msra.mxu0 0
        %2082 = vmatprep.subr.bf16.mxu0 0
        %2083 = vmatpush1.bf16.msra.mxu0 0
        %2084 = vmatprep.subr.bf16.mxu0 0
        %2085 = vmatpush1.bf16.msra.mxu0 0
        %2086 = vmatprep.subr.bf16.mxu0 0
        %2087 = vmatpush1.bf16.msra.mxu0 0
        %2088 = vmatprep.subr.bf16.mxu0 0
        %2089 = vmatpush1.bf16.msra.mxu0 0
        %2090 = vmatprep.subr.bf16.mxu0 0
        %2091 = vmatpush1.bf16.msra.mxu0 0
        %2092 = vmatprep.subr.bf16.mxu0 0
        %2093 = vmatpush1.bf16.msra.mxu0 0
        %2094 = vmatprep.subr.bf16.mxu0 0
        %2095 = vmatpush1.bf16.msra.mxu0 0
        %2096 = vmatprep.mubr.bf16.mxu0 0
        %2097 = vmatmul.mubr.bf16.gmra.mrb[0].mxu0 %v2062
        %v2098 = vpop.f32.mrb[0].mxu0
        %v2099 = vadd.f32 %v2047, %v2098
        %v2100 = vpop.f32.mrb[0].mxu0
        %v2101 = vpop.f32.mrb[0].mxu0
        %v2102 = vpop.f32.mrb[0].mxu0
        %2103 = vdwg.mxu0
        %v2104 = vmax.f32 %v2099, 0.0
        %v2105 = vpack.c.bf16 %v2104, %v2104
        %v2106 = vld [vmem:[%s13] sm:$0xf]
        %v2107 = vld [vmem:[%s13 + $0x4] sm:$0xf]
        %v2108 = vld [vmem:[%s13 + $0x8] sm:$0xf]
        %v2109 = vld [vmem:[%s13 + $0xc] sm:$0xf]
        %v2110 = vld [vmem:[%s13 + $0x10] sm:$0xf]
        %v2111 = vld [vmem:[%s13 + $0x14] sm:$0xf]
        %v2112 = vld [vmem:[%s13 + $0x18] sm:$0xf]
        %v2113 = vld [vmem:[%s13 + $0x1c] sm:$0xf]
        %v2114 = vld [vmem:[%s14] sm:$0x1]
        %v2116 = vlaneseq
        %v2117 = vshrl.u32 %v2116, 7
        %v2118 = vsub.s32 0, %v2117
        %v2119 = vrot.slane %v2114, %v2118
        %v2129 = vunpack.c.l.b16 %v2106
        %v2130 = vunpack.c.l.b16 %v2107
        %v2131 = vunpack.c.l.b16 %v2108
        %v2132 = vunpack.c.l.b16 %v2109
        %v2133 = vunpack.c.l.b16 %v2110
        %v2134 = vunpack.c.l.b16 %v2111
        %v2135 = vunpack.c.l.b16 %v2112
        %v2136 = vunpack.c.l.b16 %v2113
        %v2137 = vpack.c.b16 %v2130, %v2129
        %v2138 = vpack.c.b16 %v2132, %v2131
        %v2139 = vpack.c.b16 %v2134, %v2133
        %v2140 = vpack.c.b16 %v2136, %v2135
        %vm2145 = vcmask 523264
        %v2147 = vsel %vm2145, %v2105, 0
        %2149 = vmatprep.subr.bf16.mxu0 0
        %2150 = vmatpush1.bf16.msra.mxu0 %v2137
        %2151 = vmatprep.subr.bf16.mxu0 0
        %2152 = vmatpush1.bf16.msra.mxu0 %v2138
        %2153 = vmatprep.subr.bf16.mxu0 0
        %2154 = vmatpush1.bf16.msra.mxu0 %v2139
        %2155 = vmatprep.subr.bf16.mxu0 0
        %2156 = vmatpush1.bf16.msra.mxu0 %v2140
        %2157 = vmatprep.subr.bf16.mxu0 0
        %2158 = vmatpush1.bf16.msra.mxu0 0
        %2159 = vmatprep.subr.bf16.mxu0 0
        %2160 = vmatpush1.bf16.msra.mxu0 0
        %2161 = vmatprep.subr.bf16.mxu0 0
        %2162 = vmatpush1.bf16.msra.mxu0 0
        %2163 = vmatprep.subr.bf16.mxu0 0
        %2164 = vmatpush1.bf16.msra.mxu0 0
        %2165 = vmatprep.subr.bf16.mxu0 0
        %2166 = vmatpush1.bf16.msra.mxu0 0
        %2167 = vmatprep.subr.bf16.mxu0 0
        %2168 = vmatpush1.bf16.msra.mxu0 0
        %2169 = vmatprep.subr.bf16.mxu0 0
        %2170 = vmatpush1.bf16.msra.mxu0 0
        %2171 = vmatprep.subr.bf16.mxu0 0
        %2172 = vmatpush1.bf16.msra.mxu0 0
        %2173 = vmatprep.subr.bf16.mxu0 0
        %2174 = vmatpush1.bf16.msra.mxu0 0
        %2175 = vmatprep.subr.bf16.mxu0 0
        %2176 = vmatpush1.bf16.msra.mxu0 0
        %2177 = vmatprep.subr.bf16.mxu0 0
        %2178 = vmatpush1.bf16.msra.mxu0 0
        %2179 = vmatprep.subr.bf16.mxu0 0
        %2180 = vmatpush1.bf16.msra.mxu0 0
        %2181 = vmatprep.mubr.bf16.mxu0 0
        %2182 = vmatmul.mubr.bf16.gmra.mrb[0].mxu0 %v2147
        %v2183 = vpop.f32.mrb[0].mxu0
        %v2184 = vadd.f32 %v2119, %v2183
        %v2185 = vpop.f32.mrb[0].mxu0
        %v2186 = vpop.f32.mrb[0].mxu0
        %v2187 = vpop.f32.mrb[0].mxu0
        %2188 = vdwg.mxu0
        %v2189 = vadd.f32 %v2184, %v2036
        %v2190 = vld [vmem:[%s15] sm:$0x1]
        %v2191 = vld [vmem:[%s16] sm:$0x1]
        %v2192 = vsel %vm656, %v2189, 0.0
        %2193 = vadd.xlane.f32.xlu0 %v2192
        %v2194 = vpop.xlane.xlu0 %2193
        %v2195 = vmul.f32 %v2194, %v2012
        %v2196 = vsub.f32 %v2189, %v2195
        %v2197 = vmul.f32 %v2196, %v2196
        %v2198 = vsel %vm656, %v2197, 0.0
        %2199 = vadd.xlane.f32.xlu0 %v2198
        %v2200 = vpop.xlane.xlu0 %2199
        %v2201 = vmul.f32 %v2200, %v2012
        %v2202 = vadd.f32 %v2201, 1e-06
        %v2203 = vrsqrt.pop %v2202
        %v2204 = vmul.f32 %v2196, %v2203
        %v2206 = vlaneseq
        %v2207 = vshrl.u32 %v2206, 7
        %v2208 = vsub.s32 0, %v2207
        %v2209 = vrot.slane %v2190, %v2208
        %v2211 = vmul.f32 %v2204, %v2209
        %v2213 = vlaneseq
        %v2214 = vshrl.u32 %v2213, 7
        %v2215 = vsub.s32 0, %v2214
        %v2216 = vrot.slane %v2191, %v2215
        %v2218 = vadd.f32 %v2211, %v2216
        %2219 = vst.msk [vmem:[%s586] sm:$0xff] %vm656, %v2218
        %s2220 = sand.u32 %s420, 1
        %s2221 = scalar_lea.sflag [#allocation3], %s2220
        %s2222 = sand.u32 %s420, 1
        %s2223 = smul.addr %s2222, 8
        %s2224 = scalar_lea.vmem [#allocation2], %s2223
        %s2225 = sand.u32 %s448, 1
        %s2226 = scalar_lea.sflag [#allocation5], %s2225
        %s2227 = sand.u32 %s448, 1
        %s2228 = smul.addr %s2227, 32
        %s2229 = scalar_lea.vmem [#allocation4], %s2228
        // Predicated region
        $region89: #{tpu_custom_call.1} parent=87 // pred_check
          %p2230 = pneg %p430
        $region90: #{tpu_custom_call.1} parent=87 // pred_check_branch
          %2232 = sbr.rel (%p2230) target = $region92
        $region91: #{tpu_custom_call.1} parent=87 // pred_region
          %s2234 = ssub.s32 128, 128
          %2235 = vsyncadd %s2221, %s2234
          %s2236 = sadd.s32 %s41, %s40
          %s2237 = smul.addr %s2236, 128
          %s2238 = scalar_lea.hbm %s17, %s2237
          %s2240 = sshll.u32 %s2224, 4
          %s2241 = int_to_ptr.vmem [resolvable:$true] %s2240
          %2243 = dma.vmem_to_hbm [thread:$0]  %s2241, 128, %s2238, %s2221
        $region92: #{tpu_custom_call.1} parent=87 // pred_fallthru
          _
        // Predicated region
        $region93: #{tpu_custom_call.1} parent=87 // pred_check
          %p2244 = pneg %p458
        $region94: #{tpu_custom_call.1} parent=87 // pred_check_branch
          %2246 = sbr.rel (%p2244) target = $region96
        $region95: #{tpu_custom_call.1} parent=87 // pred_region
          %s2248 = ssub.s32 512, 512
          %2249 = vsyncadd %s2226, %s2248
          %s2250 = smul.addr %s40, 4
          %s2251 = sadd.s32 %s41, %s2250
          %s2252 = smul.addr %s2251, 128
          %s2253 = scalar_lea.hbm %s18, %s2252
          %s2254 = sshll.u32 %s2229, 4
          %s2255 = int_to_ptr.vmem [resolvable:$true] %s2254
          %2260 = dma.vmem_to_hbm [thread:$0]  %s2255, 512, %s2253, %s2226, 128, 128, 8
        $region96: #{tpu_custom_call.1} parent=87 // pred_fallthru
          _
      $region88: #{tpu_custom_call.1} parent=5 // pred_fallthru
        _
      %p2261 = scmp.le.s32.totalorder 2, %s31
      // Predicated region
      $region97: #{tpu_custom_call.1} parent=5 // pred_check
        %p2262 = pneg %p2261
      $region98: #{tpu_custom_call.1} parent=5 // pred_check_branch
        %2264 = sbr.rel (%p2262) target = $region100
      $region99: #{tpu_custom_call.1} parent=5 // pred_region
        %s2265 = ssub.s32 %s31, 2
        // Predicated region
        $region101: #{tpu_custom_call.1} parent=99 // pred_check
          %p2266 = pneg %p436
        $region102: #{tpu_custom_call.1} parent=99 // pred_check_branch
          %2268 = sbr.rel (%p2266) target = $region104
        $region103: #{tpu_custom_call.1} parent=99 // pred_region
          %s2269 = sand.u32 %s421, 1
          %s2270 = scalar_lea.sflag [#allocation3], %s2269
          %s2271 = sand.u32 %s421, 1
          %s2272 = smul.addr %s2271, 8
          %s2273 = scalar_lea.vmem [#allocation2], %s2272
          %2274 = dma.done %s2270, 128
        $region104: #{tpu_custom_call.1} parent=99 // pred_fallthru
          _
        // Predicated region
        $region105: #{tpu_custom_call.1} parent=99 // pred_check
          %p2275 = pneg %p464
        $region106: #{tpu_custom_call.1} parent=99 // pred_check_branch
          %2277 = sbr.rel (%p2275) target = $region108
        $region107: #{tpu_custom_call.1} parent=99 // pred_region
          %s2278 = sand.u32 %s449, 1
          %s2279 = scalar_lea.sflag [#allocation5], %s2278
          %s2280 = sand.u32 %s449, 1
          %s2281 = smul.addr %s2280, 32
          %s2282 = scalar_lea.vmem [#allocation4], %s2281
          %2283 = dma.done %s2279, 512
        $region108: #{tpu_custom_call.1} parent=99 // pred_fallthru
          _
      $region100: #{tpu_custom_call.1} parent=5 // pred_fallthru
        _
    $region6: #{tpu_custom_call.1} parent=1 // loop_footer
      %s35 = sadd.s32 1, %s31
    $region7: #{tpu_custom_call.1} parent=1 // loop_footer_branch
      %30 = sbr.rel target = $region3
    $region8: #{tpu_custom_call.1} parent=1 // loop_exit
      _
    %2284 = vsyncpa [#allocation3], 1
    %s2285 = scalar_lea.sflag [#allocation3], 1
    %2286 = vsyncpa %s2285, 1
    %2287 = vsyncpa [#allocation5], 1
    %s2288 = scalar_lea.sflag [#allocation5], 1
    %2289 = vsyncpa %s2288, 1

</llo_original>
